<compile_context>
chip_gen: v5e
topology: v5e:2x2
jax: 0.10.0
libtpu: 0.0.40
codegen_flags: <defaults>
</compile_context>

<pallas_src>
import jax
import jax.numpy as jnp
from jax import lax
from jax.experimental import pallas as pl
from jax.experimental.pallas import tpu as pltpu

DIM = 512
NUM_HEADS = 2
DROP_P = 0.1
# PyTorch module: scaled_qk = qk.div((dim/num_heads)**(-0.5)) == qk * sqrt(dim/num_heads)
Q_SCALE = float((DIM / NUM_HEADS) ** 0.5)  # = 16.0


def attn_kernel(q_ref, k_ref, v_ref, w_ref, b_ref, u_ref, o_ref):
    """q_ref/k_ref/v_ref: (S, DIM) f32; w_ref: (DIM, 3*DIM) bf16 packed [Wq|Wk|Wv];
    b_ref: (1, 3*DIM) f32; u_ref: (S_q, S_k) f32 U(0,1) dropout randoms; o_ref: (S_q, DIM) f32."""

    def proj(x_ref, col):
        # static, lane-aligned ref slices -> zero-cost views of the packed slab
        w_c = w_ref[:, col * DIM:(col + 1) * DIM]          # bf16 (DIM, DIM)
        b_c = b_ref[:, col * DIM:(col + 1) * DIM]          # f32  (1, DIM)
        x = x_ref[...].astype(jnp.bfloat16)                # bf16 MXU operand only
        return jnp.dot(x, w_c, preferred_element_type=jnp.float32) + b_c

    q = proj(q_ref, 0) * Q_SCALE   # scale folded into q (module's .div(scale_factor))
    k = proj(k_ref, 1)
    v = proj(v_ref, 2)

    # q @ k^T without materializing k.T: contract over the last dims.
    qk = lax.dot_general(q, k, dimension_numbers=(((1,), (1,)), ((), ())),
                         preferred_element_type=jnp.float32)

    # Softmax over the last dim; dropout keep-scale 1/(1-p) folded into the
    # per-row normalization so there is a single multiply + select.
    m = jnp.max(qk, axis=-1, keepdims=True)
    e = jnp.exp(qk - m)
    denom = jnp.sum(e, axis=-1, keepdims=True)
    row_scale = (1.0 / (1.0 - DROP_P)) / denom             # (S_q, 1)
    keep = u_ref[...] >= DROP_P
    p_drop = jnp.where(keep, e * row_scale, 0.0)

    o_ref[...] = jnp.dot(p_drop, v, preferred_element_type=jnp.float32)


def init_params(key, dim):
    """torch.nn.Linear-style init U(-1/sqrt(in), 1/sqrt(in)); weights pre-transposed
    to (in, out) and packed into one bf16 slab, biases packed and kept in f32."""
    bound = 1.0 / (dim ** 0.5)
    ks = jax.random.split(key, 6)

    def u(k, shape):
        return jax.random.uniform(k, shape, jnp.float32, -bound, bound)

    wq, bq = u(ks[0], (dim, dim)), u(ks[1], (1, dim))
    wk, bk = u(ks[2], (dim, dim)), u(ks[3], (1, dim))
    wv, bv = u(ks[4], (dim, dim)), u(ks[5], (1, dim))
    w_all = jnp.concatenate([wq, wk, wv], axis=1).astype(jnp.bfloat16)  # (dim, 3*dim)
    b_all = jnp.concatenate([bq, bk, bv], axis=1)                       # (1, 3*dim) f32
    return w_all, b_all


@jax.jit
def model_forward(query, key, value, w_all, b_all, dropout_u):
    s_q = query.shape[0]
    s_k = key.shape[0]
    # TODO(synk): for S beyond ~1K, switch to a flash-style tiled grid (online
    # softmax) instead of materializing the (S_q, S_k) logits in VMEM (v7x has
    # only 64 MiB physical VMEM). The production shape here is S=1.
    flops = 2 * (s_q + 2 * s_k) * DIM * DIM + 4 * s_q * s_k * DIM
    bytes_accessed = (w_all.size * 2 + b_all.size * 4
                      + (query.size + key.size + value.size) * 4
                      + dropout_u.size * 4 + s_q * DIM * 4)
    return pl.pallas_call(
        attn_kernel,
        out_shape=jax.ShapeDtypeStruct((s_q, DIM), jnp.float32),
        in_specs=[pl.BlockSpec(memory_space=pltpu.MemorySpace.VMEM)] * 6,
        out_specs=pl.BlockSpec(memory_space=pltpu.MemorySpace.VMEM),
        cost_estimate=pl.CostEstimate(flops=int(flops),
                                      transcendentals=int(s_q * s_k),
                                      bytes_accessed=int(bytes_accessed)),
    )(query, key, value, w_all, b_all, dropout_u)


if __name__ == "__main__":
    root = jax.random.PRNGKey(0)
    k_params, k_q, k_k, k_v, k_drop = jax.random.split(root, 5)

    w_all, b_all = init_params(k_params, DIM)

    # module-level inputs in the PyTorch script are (1, dim)
    query = jax.random.normal(k_q, (1, DIM), jnp.float32)
    key_in = jax.random.normal(k_k, (1, DIM), jnp.float32)
    value = jax.random.normal(k_v, (1, DIM), jnp.float32)

    # Host-generated dropout randoms (training-mode F.dropout semantics:
    # drop w.p. p, scale kept elements by 1/(1-p)); the PRNG stream cannot
    # match PyTorch bit-for-bit.
    dropout_u = jax.random.uniform(k_drop, (query.shape[0], key_in.shape[0]),
                                   jnp.float32)

    out = model_forward(query, key_in, value, w_all, b_all, dropout_u)
    out = jax.block_until_ready(out)
    assert out.shape == (1, DIM) and out.dtype == jnp.float32
    print("KERNEL_OK")
</pallas_src>

<mosaic_0001>
module attributes {stable_mosaic.version = 11 : i64} {
  func.func @attn_kernel(%arg0: memref<1x512xf32, #tpu.memory_space<vmem>>, %arg1: memref<1x512xf32, #tpu.memory_space<vmem>>, %arg2: memref<1x512xf32, #tpu.memory_space<vmem>>, %arg3: memref<512x1536xbf16, #tpu.memory_space<vmem>>, %arg4: memref<1x1536xf32, #tpu.memory_space<vmem>>, %arg5: memref<1x1xf32, #tpu.memory_space<vmem>>, %arg6: memref<1x512xf32, #tpu.memory_space<vmem>>) attributes {dimension_semantics = [], scalar_prefetch = 0 : i64, scratch_operands = 0 : i64, tpu.core_type = #tpu.core_type<tc>} {
    %c0 = arith.constant 0 : index
    %c0_0 = arith.constant 0 : index
    %0 = vector.load %arg3[%c0, %c0_0] : memref<512x1536xbf16, #tpu.memory_space<vmem>>, vector<512x512xbf16>
    %c0_1 = arith.constant 0 : index
    %c0_2 = arith.constant 0 : index
    %1 = vector.load %arg4[%c0_1, %c0_2] : memref<1x1536xf32, #tpu.memory_space<vmem>>, vector<1x512xf32>
    %c0_3 = arith.constant 0 : index
    %c0_4 = arith.constant 0 : index
    %2 = vector.load %arg0[%c0_3, %c0_4] : memref<1x512xf32, #tpu.memory_space<vmem>>, vector<1x512xf32>
    %3 = arith.truncf %2 : vector<1x512xf32> to vector<1x512xbf16>
    %cst = arith.constant dense<0.000000e+00> : vector<1x512xf32>
    %4 = tpu.matmul %3, %0, %cst {dimension_numbers = #tpu.dot_dimension_numbers<[1], [0], [0], [1], [0, 0, 1, 1], [], []>} : vector<1x512xbf16>, vector<512x512xbf16>, vector<1x512xf32> -> vector<1x512xf32>
    %5 = arith.addf %4, %1 : vector<1x512xf32>
    %cst_5 = arith.constant 1.600000e+01 : f32
    %6 = vector.broadcast %cst_5 : f32 to vector<1x512xf32>
    %7 = arith.mulf %5, %6 : vector<1x512xf32>
    %c0_6 = arith.constant 0 : index
    %c512 = arith.constant 512 : index
    %8 = vector.load %arg3[%c0_6, %c512] : memref<512x1536xbf16, #tpu.memory_space<vmem>>, vector<512x512xbf16>
    %c0_7 = arith.constant 0 : index
    %c512_8 = arith.constant 512 : index
    %9 = vector.load %arg4[%c0_7, %c512_8] : memref<1x1536xf32, #tpu.memory_space<vmem>>, vector<1x512xf32>
    %c0_9 = arith.constant 0 : index
    %c0_10 = arith.constant 0 : index
    %10 = vector.load %arg1[%c0_9, %c0_10] : memref<1x512xf32, #tpu.memory_space<vmem>>, vector<1x512xf32>
    %11 = arith.truncf %10 : vector<1x512xf32> to vector<1x512xbf16>
    %cst_11 = arith.constant dense<0.000000e+00> : vector<1x512xf32>
    %12 = tpu.matmul %11, %8, %cst_11 {dimension_numbers = #tpu.dot_dimension_numbers<[1], [0], [0], [1], [0, 0, 1, 1], [], []>} : vector<1x512xbf16>, vector<512x512xbf16>, vector<1x512xf32> -> vector<1x512xf32>
    %13 = arith.addf %12, %9 : vector<1x512xf32>
    %c0_12 = arith.constant 0 : index
    %c1024 = arith.constant 1024 : index
    %14 = vector.load %arg3[%c0_12, %c1024] : memref<512x1536xbf16, #tpu.memory_space<vmem>>, vector<512x512xbf16>
    %c0_13 = arith.constant 0 : index
    %c1024_14 = arith.constant 1024 : index
    %15 = vector.load %arg4[%c0_13, %c1024_14] : memref<1x1536xf32, #tpu.memory_space<vmem>>, vector<1x512xf32>
    %c0_15 = arith.constant 0 : index
    %c0_16 = arith.constant 0 : index
    %16 = vector.load %arg2[%c0_15, %c0_16] : memref<1x512xf32, #tpu.memory_space<vmem>>, vector<1x512xf32>
    %17 = arith.truncf %16 : vector<1x512xf32> to vector<1x512xbf16>
    %cst_17 = arith.constant dense<0.000000e+00> : vector<1x512xf32>
    %18 = tpu.matmul %17, %14, %cst_17 {dimension_numbers = #tpu.dot_dimension_numbers<[1], [0], [0], [1], [0, 0, 1, 1], [], []>} : vector<1x512xbf16>, vector<512x512xbf16>, vector<1x512xf32> -> vector<1x512xf32>
    %19 = arith.addf %18, %15 : vector<1x512xf32>
    %cst_18 = arith.constant dense<0.000000e+00> : vector<1x1xf32>
    %20 = tpu.matmul %7, %13, %cst_18 {dimension_numbers = #tpu.dot_dimension_numbers<[1], [1], [0], [0], [0, 0, 1, 0], [], []>} : vector<1x512xf32>, vector<1x512xf32>, vector<1x1xf32> -> vector<1x1xf32>
    %cst_19 = arith.constant dense<0xFF800000> : vector<1xf32>
    %21 = vector.multi_reduction <maximumf>, %20, %cst_19 [1] : vector<1x1xf32> to vector<1xf32>
    %22 = vector.shape_cast %21 : vector<1xf32> to vector<1x1xf32>
    %23 = arith.subf %20, %22 : vector<1x1xf32>
    %24 = math.exp %23 : vector<1x1xf32>
    %cst_20 = arith.constant dense<0.000000e+00> : vector<1xf32>
    %25 = vector.multi_reduction <add>, %24, %cst_20 [1] : vector<1x1xf32> to vector<1xf32>
    %26 = vector.shape_cast %25 : vector<1xf32> to vector<1x1xf32>
    %cst_21 = arith.constant 1.11111116 : f32
    %27 = vector.broadcast %cst_21 : f32 to vector<1x1xf32>
    %28 = arith.divf %27, %26 : vector<1x1xf32>
    %c0_22 = arith.constant 0 : index
    %c0_23 = arith.constant 0 : index
    %29 = vector.load %arg5[%c0_22, %c0_23] : memref<1x1xf32, #tpu.memory_space<vmem>>, vector<1x1xf32>
    %cst_24 = arith.constant 1.000000e-01 : f32
    %30 = vector.broadcast %cst_24 : f32 to vector<1x1xf32>
    %31 = arith.cmpf oge, %29, %30 : vector<1x1xf32>
    %32 = arith.mulf %24, %28 : vector<1x1xf32>
    %cst_25 = arith.constant 0.000000e+00 : f32
    %33 = vector.broadcast %cst_25 : f32 to vector<1x1xf32>
    %34 = arith.select %31, %32, %33 : vector<1x1xi1>, vector<1x1xf32>
    %cst_26 = arith.constant dense<0.000000e+00> : vector<1x512xf32>
    %35 = tpu.matmul %34, %19, %cst_26 {dimension_numbers = #tpu.dot_dimension_numbers<[1], [0], [0], [1], [0, 0, 1, 1], [], []>} : vector<1x1xf32>, vector<1x512xf32>, vector<1x512xf32> -> vector<1x512xf32>
    %c0_27 = arith.constant 0 : index
    %c0_28 = arith.constant 0 : index
    %36 = vector.load %arg6[%c0_27, %c0_28] : memref<1x512xf32, #tpu.memory_space<vmem>>, vector<1x512xf32>
    tpu.vector_store %arg6[%c0_27, %c0_28], %35 {strides = array<i32>} : memref<1x512xf32, #tpu.memory_space<vmem>>, vector<1x512xf32>,
    return
  }
}

</mosaic_0001>

<llo_original>
// kernel: model_forward.1
$region0: #{model_forward.1}
  #allocation0 [shape = 'u32[]', space=smem, size = 0x4, offset = 0x4, fixed_abs, tag = 'smem constant byte address 0x4 - core index']
  #allocation1 [shape = 'u32[72,128]{1,0:T(1,128)}', space=vmem, size = 0x9000, scoped, tag = 'internal scratch']
  #allocation2 [shape = 'f32[1,1]{1,0:T(1,128)S(1)}', space=vmem, size = 0x200, scoped, tag = 'scoped memory for model_forward.1']
  %s0 = inlined_call_operand.hbm [shape: f32[1,512], index: 0, kind: input, shape index: {}]
  %s1 = inlined_call_operand.hbm [shape: f32[1,512], index: 1, kind: input, shape index: {}]
  %s2 = inlined_call_operand.hbm [shape: f32[1,512], index: 2, kind: input, shape index: {}]
  %s3 = inlined_call_operand.hbm [shape: bf16[512,1536], index: 3, kind: input, shape index: {}]
  %s4 = inlined_call_operand.hbm [shape: f32[1,1536], index: 4, kind: input, shape index: {}]
  %s5 = inlined_call_operand.<no memory space> [shape: f32[1,1], index: 5, kind: input, shape index: {}]
  %s6 = inlined_call_operand.hbm [shape: f32[1,512], index: 6, kind: output, shape index: {}]
  %s7 = sld [smem:[#allocation0]]
  $region54: #{model_forward.1} parent=0
    _
  %s9 = ssub.s32 1, %s7
  %s10 = scalar_select 0, %s9, %s7
  %v11 = vstv %s5
  %12 = vst [vmem:[#allocation2] sm:$0x1] %v11
  $region1: #{model_forward.1} parent=0
    #allocation3 [shape = 'u8[2048]{0}', space=vmem, size = 0x800, scoped, tag = 'input window, operand 0, single buffered']
    #allocation4 [shape = 's32[1]{0}', space=sflag, size = 0x4, scoped, tag = 'scoped memory for model_forward.1']
    #allocation5 [shape = 's32[1]{0}', space=sflag, size = 0x4, scoped, tag = 'scoped memory for model_forward.1']
    #allocation6 [shape = 'u8[2048]{0}', space=vmem, size = 0x800, scoped, tag = 'input window, operand 1, single buffered']
    #allocation7 [shape = 's32[1]{0}', space=sflag, size = 0x4, scoped, tag = 'scoped memory for model_forward.1']
    #allocation8 [shape = 'u8[2048]{0}', space=vmem, size = 0x800, scoped, tag = 'input window, operand 2, single buffered']
    #allocation9 [shape = 'u8[1572864]{0}', space=vmem, size = 0x180000, scoped, tag = 'input window, operand 3, single buffered']
    #allocation10 [shape = 's32[1]{0}', space=sflag, size = 0x4, scoped, tag = 'scoped memory for model_forward.1']
    #allocation11 [shape = 'u8[6144]{0}', space=vmem, size = 0x1800, scoped, tag = 'input window, operand 4, single buffered']
    #allocation12 [shape = 'u8[2048]{0}', space=vmem, size = 0x800, scoped, tag = 'output window, operand 0, single buffered']
    %13 = vsyncpa [#allocation4], 0
    %14 = vsyncpa [#allocation7], 0
    %15 = vsyncpa [#allocation10], 0
    %16 = vsyncpa [#allocation5], 0
    // Predicated region
    $region2: #{model_forward.1} parent=1 // pred_check
      _
    $region3: #{model_forward.1} parent=1 // pred_check_branch
      %18 = sbr.rel (0) target = $region5
    $region4: #{model_forward.1} parent=1 // pred_region
      %20 = vsyncadd [#allocation4], 0
      %s22 = sshll.u32 %s0, 4
      %s23 = int_to_ptr.hbm [resolvable:$true] %s22
      %s24 = sshll.u32 [#allocation3], 4
      %s25 = int_to_ptr.vmem [resolvable:$true] %s24
      %27 = dma.hbm_to_vmem [thread:$0]  %s23, 64, %s25, [#allocation4]
    $region5: #{model_forward.1} parent=1 // pred_fallthru
      _
    // Predicated region
    $region6: #{model_forward.1} parent=1 // pred_check
      _
    $region7: #{model_forward.1} parent=1 // pred_check_branch
      %29 = sbr.rel (0) target = $region9
    $region8: #{model_forward.1} parent=1 // pred_region
      %31 = vsyncadd [#allocation7], 0
      %s33 = sshll.u32 %s1, 4
      %s34 = int_to_ptr.hbm [resolvable:$true] %s33
      %s35 = sshll.u32 [#allocation6], 4
      %s36 = int_to_ptr.vmem [resolvable:$true] %s35
      %38 = dma.hbm_to_vmem [thread:$0]  %s34, 64, %s36, [#allocation7]
    $region9: #{model_forward.1} parent=1 // pred_fallthru
      _
    // Predicated region
    $region10: #{model_forward.1} parent=1 // pred_check
      _
    $region11: #{model_forward.1} parent=1 // pred_check_branch
      %40 = sbr.rel (0) target = $region13
    $region12: #{model_forward.1} parent=1 // pred_region
      %42 = vsyncadd [#allocation7], 0
      %s44 = sshll.u32 %s2, 4
      %s45 = int_to_ptr.hbm [resolvable:$true] %s44
      %s46 = sshll.u32 [#allocation8], 4
      %s47 = int_to_ptr.vmem [resolvable:$true] %s46
      %49 = dma.hbm_to_vmem [thread:$0]  %s45, 64, %s47, [#allocation7]
    $region13: #{model_forward.1} parent=1 // pred_fallthru
      _
    // Predicated region
    $region14: #{model_forward.1} parent=1 // pred_check
      _
    $region15: #{model_forward.1} parent=1 // pred_check_branch
      %51 = sbr.rel (0) target = $region17
    $region16: #{model_forward.1} parent=1 // pred_region
      %53 = vsyncadd [#allocation10], 0
      %s54 = sshll.u32 %s3, 4
      %s55 = int_to_ptr.hbm [resolvable:$true] %s54
      %s56 = sshll.u32 [#allocation9], 4
      %s57 = int_to_ptr.vmem [resolvable:$true] %s56
      %62 = dma.hbm_to_vmem [thread:$0]  %s55, 49152, %s57, [#allocation10], 768, 768, 48
    $region17: #{model_forward.1} parent=1 // pred_fallthru
      _
    // Predicated region
    $region18: #{model_forward.1} parent=1 // pred_check
      _
    $region19: #{model_forward.1} parent=1 // pred_check_branch
      %64 = sbr.rel (0) target = $region21
    $region20: #{model_forward.1} parent=1 // pred_region
      %66 = vsyncadd [#allocation10], 0
      %s68 = sshll.u32 %s4, 4
      %s69 = int_to_ptr.hbm [resolvable:$true] %s68
      %s70 = sshll.u32 [#allocation11], 4
      %s71 = int_to_ptr.vmem [resolvable:$true] %s70
      %73 = dma.hbm_to_vmem [thread:$0]  %s69, 192, %s71, [#allocation10]
    $region21: #{model_forward.1} parent=1 // pred_fallthru
      _
    // Predicated region
    $region22: #{model_forward.1} parent=1 // pred_check
      _
    $region23: #{model_forward.1} parent=1 // pred_check_branch
      %75 = sbr.rel (0) target = $region25
    $region24: #{model_forward.1} parent=1 // pred_region
      _
    $region25: #{model_forward.1} parent=1 // pred_fallthru
      _
    // Predicated region
    $region26: #{model_forward.1} parent=1 // pred_check
      _
    $region27: #{model_forward.1} parent=1 // pred_check_branch
      %77 = sbr.rel (0) target = $region29
    $region28: #{model_forward.1} parent=1 // pred_region
      %79 = dma.done [#allocation4], 64
    $region29: #{model_forward.1} parent=1 // pred_fallthru
      _
    // Predicated region
    $region30: #{model_forward.1} parent=1 // pred_check
      _
    $region31: #{model_forward.1} parent=1 // pred_check_branch
      %81 = sbr.rel (0) target = $region33
    $region32: #{model_forward.1} parent=1 // pred_region
      %83 = dma.done [#allocation7], 64
    $region33: #{model_forward.1} parent=1 // pred_fallthru
      _
    // Predicated region
    $region34: #{model_forward.1} parent=1 // pred_check
      _
    $region35: #{model_forward.1} parent=1 // pred_check_branch
      %85 = sbr.rel (0) target = $region37
    $region36: #{model_forward.1} parent=1 // pred_region
      %87 = dma.done [#allocation7], 64
    $region37: #{model_forward.1} parent=1 // pred_fallthru
      _
    // Predicated region
    $region38: #{model_forward.1} parent=1 // pred_check
      _
    $region39: #{model_forward.1} parent=1 // pred_check_branch
      %89 = sbr.rel (0) target = $region41
    $region40: #{model_forward.1} parent=1 // pred_region
      %91 = dma.done [#allocation10], 49152
    $region41: #{model_forward.1} parent=1 // pred_fallthru
      _
    // Predicated region
    $region42: #{model_forward.1} parent=1 // pred_check
      _
    $region43: #{model_forward.1} parent=1 // pred_check_branch
      %93 = sbr.rel (0) target = $region45
    $region44: #{model_forward.1} parent=1 // pred_region
      %95 = dma.done [#allocation10], 192
    $region45: #{model_forward.1} parent=1 // pred_fallthru
      _
    %v96 = vld [vmem:[#allocation9] sm:$0xff]
    %v97 = vld [vmem:[#allocation9 + $0x8] sm:$0xff]
    %v98 = vld [vmem:[#allocation9 + $0x30] sm:$0xff]
    %v99 = vld [vmem:[#allocation9 + $0x38] sm:$0xff]
    %v100 = vld [vmem:[#allocation9 + $0x60] sm:$0xff]
    %v101 = vld [vmem:[#allocation9 + $0x68] sm:$0xff]
    %v102 = vld [vmem:[#allocation9 + $0x90] sm:$0xff]
    %v103 = vld [vmem:[#allocation9 + $0x98] sm:$0xff]
    %v104 = vld [vmem:[#allocation9 + $0xc0] sm:$0xff]
    %v105 = vld [vmem:[#allocation9 + $0xc8] sm:$0xff]
    %v106 = vld [vmem:[#allocation9 + $0xf0] sm:$0xff]
    %v107 = vld [vmem:[#allocation9 + $0xf8] sm:$0xff]
    %v108 = vld [vmem:[#allocation9 + $0x120] sm:$0xff]
    %v109 = vld [vmem:[#allocation9 + $0x128] sm:$0xff]
    %v110 = vld [vmem:[#allocation9 + $0x150] sm:$0xff]
    %v111 = vld [vmem:[#allocation9 + $0x158] sm:$0xff]
    %v112 = vld [vmem:[#allocation9 + $0x180] sm:$0xff]
    %v113 = vld [vmem:[#allocation9 + $0x188] sm:$0xff]
    %v114 = vld [vmem:[#allocation9 + $0x1b0] sm:$0xff]
    %v115 = vld [vmem:[#allocation9 + $0x1b8] sm:$0xff]
    %v116 = vld [vmem:[#allocation9 + $0x1e0] sm:$0xff]
    %v117 = vld [vmem:[#allocation9 + $0x1e8] sm:$0xff]
    %v118 = vld [vmem:[#allocation9 + $0x210] sm:$0xff]
    %v119 = vld [vmem:[#allocation9 + $0x218] sm:$0xff]
    %v120 = vld [vmem:[#allocation9 + $0x240] sm:$0xff]
    %v121 = vld [vmem:[#allocation9 + $0x248] sm:$0xff]
    %v122 = vld [vmem:[#allocation9 + $0x270] sm:$0xff]
    %v123 = vld [vmem:[#allocation9 + $0x278] sm:$0xff]
    %v124 = vld [vmem:[#allocation9 + $0x2a0] sm:$0xff]
    %v125 = vld [vmem:[#allocation9 + $0x2a8] sm:$0xff]
    %v126 = vld [vmem:[#allocation9 + $0x2d0] sm:$0xff]
    %v127 = vld [vmem:[#allocation9 + $0x2d8] sm:$0xff]
    %v128 = vld [vmem:[#allocation9 + $0x300] sm:$0xff]
    %v129 = vld [vmem:[#allocation9 + $0x308] sm:$0xff]
    %v130 = vld [vmem:[#allocation9 + $0x330] sm:$0xff]
    %v131 = vld [vmem:[#allocation9 + $0x338] sm:$0xff]
    %v132 = vld [vmem:[#allocation9 + $0x360] sm:$0xff]
    %v133 = vld [vmem:[#allocation9 + $0x368] sm:$0xff]
    %v134 = vld [vmem:[#allocation9 + $0x390] sm:$0xff]
    %v135 = vld [vmem:[#allocation9 + $0x398] sm:$0xff]
    %v136 = vld [vmem:[#allocation9 + $0x3c0] sm:$0xff]
    %v137 = vld [vmem:[#allocation9 + $0x3c8] sm:$0xff]
    %v138 = vld [vmem:[#allocation9 + $0x3f0] sm:$0xff]
    %v139 = vld [vmem:[#allocation9 + $0x3f8] sm:$0xff]
    %v140 = vld [vmem:[#allocation9 + $0x420] sm:$0xff]
    %v141 = vld [vmem:[#allocation9 + $0x428] sm:$0xff]
    %v142 = vld [vmem:[#allocation9 + $0x450] sm:$0xff]
    %v143 = vld [vmem:[#allocation9 + $0x458] sm:$0xff]
    %v144 = vld [vmem:[#allocation9 + $0x480] sm:$0xff]
    %v145 = vld [vmem:[#allocation9 + $0x488] sm:$0xff]
    %v146 = vld [vmem:[#allocation9 + $0x4b0] sm:$0xff]
    %v147 = vld [vmem:[#allocation9 + $0x4b8] sm:$0xff]
    %v148 = vld [vmem:[#allocation9 + $0x4e0] sm:$0xff]
    %v149 = vld [vmem:[#allocation9 + $0x4e8] sm:$0xff]
    %v150 = vld [vmem:[#allocation9 + $0x510] sm:$0xff]
    %v151 = vld [vmem:[#allocation9 + $0x518] sm:$0xff]
    %v152 = vld [vmem:[#allocation9 + $0x540] sm:$0xff]
    %v153 = vld [vmem:[#allocation9 + $0x548] sm:$0xff]
    %v154 = vld [vmem:[#allocation9 + $0x570] sm:$0xff]
    %v155 = vld [vmem:[#allocation9 + $0x578] sm:$0xff]
    %v156 = vld [vmem:[#allocation9 + $0x5a0] sm:$0xff]
    %v157 = vld [vmem:[#allocation9 + $0x5a8] sm:$0xff]
    %v158 = vld [vmem:[#allocation9 + $0x5d0] sm:$0xff]
    %v159 = vld [vmem:[#allocation9 + $0x5d8] sm:$0xff]
    %v160 = vld [vmem:[#allocation9 + $0x600] sm:$0xff]
    %v161 = vld [vmem:[#allocation9 + $0x608] sm:$0xff]
    %v162 = vld [vmem:[#allocation9 + $0x630] sm:$0xff]
    %v163 = vld [vmem:[#allocation9 + $0x638] sm:$0xff]
    %v164 = vld [vmem:[#allocation9 + $0x660] sm:$0xff]
    %v165 = vld [vmem:[#allocation9 + $0x668] sm:$0xff]
    %v166 = vld [vmem:[#allocation9 + $0x690] sm:$0xff]
    %v167 = vld [vmem:[#allocation9 + $0x698] sm:$0xff]
    %v168 = vld [vmem:[#allocation9 + $0x6c0] sm:$0xff]
    %v169 = vld [vmem:[#allocation9 + $0x6c8] sm:$0xff]
    %v170 = vld [vmem:[#allocation9 + $0x6f0] sm:$0xff]
    %v171 = vld [vmem:[#allocation9 + $0x6f8] sm:$0xff]
    %v172 = vld [vmem:[#allocation9 + $0x720] sm:$0xff]
    %v173 = vld [vmem:[#allocation9 + $0x728] sm:$0xff]
    %v174 = vld [vmem:[#allocation9 + $0x750] sm:$0xff]
    %v175 = vld [vmem:[#allocation9 + $0x758] sm:$0xff]
    %v176 = vld [vmem:[#allocation9 + $0x780] sm:$0xff]
    %v177 = vld [vmem:[#allocation9 + $0x788] sm:$0xff]
    %v178 = vld [vmem:[#allocation9 + $0x7b0] sm:$0xff]
    %v179 = vld [vmem:[#allocation9 + $0x7b8] sm:$0xff]
    %v180 = vld [vmem:[#allocation9 + $0x7e0] sm:$0xff]
    %v181 = vld [vmem:[#allocation9 + $0x7e8] sm:$0xff]
    %v182 = vld [vmem:[#allocation9 + $0x810] sm:$0xff]
    %v183 = vld [vmem:[#allocation9 + $0x818] sm:$0xff]
    %v184 = vld [vmem:[#allocation9 + $0x840] sm:$0xff]
    %v185 = vld [vmem:[#allocation9 + $0x848] sm:$0xff]
    %v186 = vld [vmem:[#allocation9 + $0x870] sm:$0xff]
    %v187 = vld [vmem:[#allocation9 + $0x878] sm:$0xff]
    %v188 = vld [vmem:[#allocation9 + $0x8a0] sm:$0xff]
    %v189 = vld [vmem:[#allocation9 + $0x8a8] sm:$0xff]
    %v190 = vld [vmem:[#allocation9 + $0x8d0] sm:$0xff]
    %v191 = vld [vmem:[#allocation9 + $0x8d8] sm:$0xff]
    %v192 = vld [vmem:[#allocation9 + $0x900] sm:$0xff]
    %v193 = vld [vmem:[#allocation9 + $0x908] sm:$0xff]
    %v194 = vld [vmem:[#allocation9 + $0x930] sm:$0xff]
    %v195 = vld [vmem:[#allocation9 + $0x938] sm:$0xff]
    %v196 = vld [vmem:[#allocation9 + $0x960] sm:$0xff]
    %v197 = vld [vmem:[#allocation9 + $0x968] sm:$0xff]
    %v198 = vld [vmem:[#allocation9 + $0x990] sm:$0xff]
    %v199 = vld [vmem:[#allocation9 + $0x998] sm:$0xff]
    %v200 = vld [vmem:[#allocation9 + $0x9c0] sm:$0xff]
    %v201 = vld [vmem:[#allocation9 + $0x9c8] sm:$0xff]
    %v202 = vld [vmem:[#allocation9 + $0x9f0] sm:$0xff]
    %v203 = vld [vmem:[#allocation9 + $0x9f8] sm:$0xff]
    %v204 = vld [vmem:[#allocation9 + $0xa20] sm:$0xff]
    %v205 = vld [vmem:[#allocation9 + $0xa28] sm:$0xff]
    %v206 = vld [vmem:[#allocation9 + $0xa50] sm:$0xff]
    %v207 = vld [vmem:[#allocation9 + $0xa58] sm:$0xff]
    %v208 = vld [vmem:[#allocation9 + $0xa80] sm:$0xff]
    %v209 = vld [vmem:[#allocation9 + $0xa88] sm:$0xff]
    %v210 = vld [vmem:[#allocation9 + $0xab0] sm:$0xff]
    %v211 = vld [vmem:[#allocation9 + $0xab8] sm:$0xff]
    %v212 = vld [vmem:[#allocation9 + $0xae0] sm:$0xff]
    %v213 = vld [vmem:[#allocation9 + $0xae8] sm:$0xff]
    %v214 = vld [vmem:[#allocation9 + $0xb10] sm:$0xff]
    %v215 = vld [vmem:[#allocation9 + $0xb18] sm:$0xff]
    %v216 = vld [vmem:[#allocation9 + $0xb40] sm:$0xff]
    %v217 = vld [vmem:[#allocation9 + $0xb48] sm:$0xff]
    %v218 = vld [vmem:[#allocation9 + $0xb70] sm:$0xff]
    %v219 = vld [vmem:[#allocation9 + $0xb78] sm:$0xff]
    %v220 = vld [vmem:[#allocation9 + $0xba0] sm:$0xff]
    %v221 = vld [vmem:[#allocation9 + $0xba8] sm:$0xff]
    %v222 = vld [vmem:[#allocation9 + $0xbd0] sm:$0xff]
    %v223 = vld [vmem:[#allocation9 + $0xbd8] sm:$0xff]
    %v224 = vld [vmem:[#allocation11] sm:$0xf]
    %v225 = vld [vmem:[#allocation3] sm:$0xf]
    %v227 = vperm.slane %v225, 0
    %v228 = vperm.slane %v225, 1
    %v229 = vperm.slane %v225, 2
    %v230 = vperm.slane %v225, 3
    %v235 = vpack.c.bf16 %v227, %v227
    %v236 = vpack.c.bf16 %v228, %v228
    %v237 = vpack.c.bf16 %v229, %v229
    %v238 = vpack.c.bf16 %v230, %v230
    %v367 = vunpack.c.l.b16 %v96
    %v368 = vunpack.c.h.b16 %v96
    %v369 = vunpack.c.l.b16 %v97
    %v370 = vunpack.c.h.b16 %v97
    %v371 = vunpack.c.l.b16 %v98
    %v372 = vunpack.c.h.b16 %v98
    %v373 = vunpack.c.l.b16 %v99
    %v374 = vunpack.c.h.b16 %v99
    %v375 = vunpack.c.l.b16 %v100
    %v376 = vunpack.c.h.b16 %v100
    %v377 = vunpack.c.l.b16 %v101
    %v378 = vunpack.c.h.b16 %v101
    %v379 = vunpack.c.l.b16 %v102
    %v380 = vunpack.c.h.b16 %v102
    %v381 = vunpack.c.l.b16 %v103
    %v382 = vunpack.c.h.b16 %v103
    %v383 = vunpack.c.l.b16 %v104
    %v384 = vunpack.c.h.b16 %v104
    %v385 = vunpack.c.l.b16 %v105
    %v386 = vunpack.c.h.b16 %v105
    %v387 = vunpack.c.l.b16 %v106
    %v388 = vunpack.c.h.b16 %v106
    %v389 = vunpack.c.l.b16 %v107
    %v390 = vunpack.c.h.b16 %v107
    %v391 = vunpack.c.l.b16 %v108
    %v392 = vunpack.c.h.b16 %v108
    %v393 = vunpack.c.l.b16 %v109
    %v394 = vunpack.c.h.b16 %v109
    %v395 = vunpack.c.l.b16 %v110
    %v396 = vunpack.c.h.b16 %v110
    %v397 = vunpack.c.l.b16 %v111
    %v398 = vunpack.c.h.b16 %v111
    %v399 = vunpack.c.l.b16 %v112
    %v400 = vunpack.c.h.b16 %v112
    %v401 = vunpack.c.l.b16 %v113
    %v402 = vunpack.c.h.b16 %v113
    %v403 = vunpack.c.l.b16 %v114
    %v404 = vunpack.c.h.b16 %v114
    %v405 = vunpack.c.l.b16 %v115
    %v406 = vunpack.c.h.b16 %v115
    %v407 = vunpack.c.l.b16 %v116
    %v408 = vunpack.c.h.b16 %v116
    %v409 = vunpack.c.l.b16 %v117
    %v410 = vunpack.c.h.b16 %v117
    %v411 = vunpack.c.l.b16 %v118
    %v412 = vunpack.c.h.b16 %v118
    %v413 = vunpack.c.l.b16 %v119
    %v414 = vunpack.c.h.b16 %v119
    %v415 = vunpack.c.l.b16 %v120
    %v416 = vunpack.c.h.b16 %v120
    %v417 = vunpack.c.l.b16 %v121
    %v418 = vunpack.c.h.b16 %v121
    %v419 = vunpack.c.l.b16 %v122
    %v420 = vunpack.c.h.b16 %v122
    %v421 = vunpack.c.l.b16 %v123
    %v422 = vunpack.c.h.b16 %v123
    %v423 = vunpack.c.l.b16 %v124
    %v424 = vunpack.c.h.b16 %v124
    %v425 = vunpack.c.l.b16 %v125
    %v426 = vunpack.c.h.b16 %v125
    %v427 = vunpack.c.l.b16 %v126
    %v428 = vunpack.c.h.b16 %v126
    %v429 = vunpack.c.l.b16 %v127
    %v430 = vunpack.c.h.b16 %v127
    %v431 = vunpack.c.l.b16 %v128
    %v432 = vunpack.c.h.b16 %v128
    %v433 = vunpack.c.l.b16 %v129
    %v434 = vunpack.c.h.b16 %v129
    %v435 = vunpack.c.l.b16 %v130
    %v436 = vunpack.c.h.b16 %v130
    %v437 = vunpack.c.l.b16 %v131
    %v438 = vunpack.c.h.b16 %v131
    %v439 = vunpack.c.l.b16 %v132
    %v440 = vunpack.c.h.b16 %v132
    %v441 = vunpack.c.l.b16 %v133
    %v442 = vunpack.c.h.b16 %v133
    %v443 = vunpack.c.l.b16 %v134
    %v444 = vunpack.c.h.b16 %v134
    %v445 = vunpack.c.l.b16 %v135
    %v446 = vunpack.c.h.b16 %v135
    %v447 = vunpack.c.l.b16 %v136
    %v448 = vunpack.c.h.b16 %v136
    %v449 = vunpack.c.l.b16 %v137
    %v450 = vunpack.c.h.b16 %v137
    %v451 = vunpack.c.l.b16 %v138
    %v452 = vunpack.c.h.b16 %v138
    %v453 = vunpack.c.l.b16 %v139
    %v454 = vunpack.c.h.b16 %v139
    %v455 = vunpack.c.l.b16 %v140
    %v456 = vunpack.c.h.b16 %v140
    %v457 = vunpack.c.l.b16 %v141
    %v458 = vunpack.c.h.b16 %v141
    %v459 = vunpack.c.l.b16 %v142
    %v460 = vunpack.c.h.b16 %v142
    %v461 = vunpack.c.l.b16 %v143
    %v462 = vunpack.c.h.b16 %v143
    %v463 = vunpack.c.l.b16 %v144
    %v464 = vunpack.c.h.b16 %v144
    %v465 = vunpack.c.l.b16 %v145
    %v466 = vunpack.c.h.b16 %v145
    %v467 = vunpack.c.l.b16 %v146
    %v468 = vunpack.c.h.b16 %v146
    %v469 = vunpack.c.l.b16 %v147
    %v470 = vunpack.c.h.b16 %v147
    %v471 = vunpack.c.l.b16 %v148
    %v472 = vunpack.c.h.b16 %v148
    %v473 = vunpack.c.l.b16 %v149
    %v474 = vunpack.c.h.b16 %v149
    %v475 = vunpack.c.l.b16 %v150
    %v476 = vunpack.c.h.b16 %v150
    %v477 = vunpack.c.l.b16 %v151
    %v478 = vunpack.c.h.b16 %v151
    %v479 = vunpack.c.l.b16 %v152
    %v480 = vunpack.c.h.b16 %v152
    %v481 = vunpack.c.l.b16 %v153
    %v482 = vunpack.c.h.b16 %v153
    %v483 = vunpack.c.l.b16 %v154
    %v484 = vunpack.c.h.b16 %v154
    %v485 = vunpack.c.l.b16 %v155
    %v486 = vunpack.c.h.b16 %v155
    %v487 = vunpack.c.l.b16 %v156
    %v488 = vunpack.c.h.b16 %v156
    %v489 = vunpack.c.l.b16 %v157
    %v490 = vunpack.c.h.b16 %v157
    %v491 = vunpack.c.l.b16 %v158
    %v492 = vunpack.c.h.b16 %v158
    %v493 = vunpack.c.l.b16 %v159
    %v494 = vunpack.c.h.b16 %v159
    %v495 = vunpack.c.l.b16 %v160
    %v496 = vunpack.c.h.b16 %v160
    %v497 = vunpack.c.l.b16 %v161
    %v498 = vunpack.c.h.b16 %v161
    %v499 = vunpack.c.l.b16 %v162
    %v500 = vunpack.c.h.b16 %v162
    %v501 = vunpack.c.l.b16 %v163
    %v502 = vunpack.c.h.b16 %v163
    %v503 = vunpack.c.l.b16 %v164
    %v504 = vunpack.c.h.b16 %v164
    %v505 = vunpack.c.l.b16 %v165
    %v506 = vunpack.c.h.b16 %v165
    %v507 = vunpack.c.l.b16 %v166
    %v508 = vunpack.c.h.b16 %v166
    %v509 = vunpack.c.l.b16 %v167
    %v510 = vunpack.c.h.b16 %v167
    %v511 = vunpack.c.l.b16 %v168
    %v512 = vunpack.c.h.b16 %v168
    %v513 = vunpack.c.l.b16 %v169
    %v514 = vunpack.c.h.b16 %v169
    %v515 = vunpack.c.l.b16 %v170
    %v516 = vunpack.c.h.b16 %v170
    %v517 = vunpack.c.l.b16 %v171
    %v518 = vunpack.c.h.b16 %v171
    %v519 = vunpack.c.l.b16 %v172
    %v520 = vunpack.c.h.b16 %v172
    %v521 = vunpack.c.l.b16 %v173
    %v522 = vunpack.c.h.b16 %v173
    %v523 = vunpack.c.l.b16 %v174
    %v524 = vunpack.c.h.b16 %v174
    %v525 = vunpack.c.l.b16 %v175
    %v526 = vunpack.c.h.b16 %v175
    %v527 = vunpack.c.l.b16 %v176
    %v528 = vunpack.c.h.b16 %v176
    %v529 = vunpack.c.l.b16 %v177
    %v530 = vunpack.c.h.b16 %v177
    %v531 = vunpack.c.l.b16 %v178
    %v532 = vunpack.c.h.b16 %v178
    %v533 = vunpack.c.l.b16 %v179
    %v534 = vunpack.c.h.b16 %v179
    %v535 = vunpack.c.l.b16 %v180
    %v536 = vunpack.c.h.b16 %v180
    %v537 = vunpack.c.l.b16 %v181
    %v538 = vunpack.c.h.b16 %v181
    %v539 = vunpack.c.l.b16 %v182
    %v540 = vunpack.c.h.b16 %v182
    %v541 = vunpack.c.l.b16 %v183
    %v542 = vunpack.c.h.b16 %v183
    %v543 = vunpack.c.l.b16 %v184
    %v544 = vunpack.c.h.b16 %v184
    %v545 = vunpack.c.l.b16 %v185
    %v546 = vunpack.c.h.b16 %v185
    %v547 = vunpack.c.l.b16 %v186
    %v548 = vunpack.c.h.b16 %v186
    %v549 = vunpack.c.l.b16 %v187
    %v550 = vunpack.c.h.b16 %v187
    %v551 = vunpack.c.l.b16 %v188
    %v552 = vunpack.c.h.b16 %v188
    %v553 = vunpack.c.l.b16 %v189
    %v554 = vunpack.c.h.b16 %v189
    %v555 = vunpack.c.l.b16 %v190
    %v556 = vunpack.c.h.b16 %v190
    %v557 = vunpack.c.l.b16 %v191
    %v558 = vunpack.c.h.b16 %v191
    %v559 = vunpack.c.l.b16 %v192
    %v560 = vunpack.c.h.b16 %v192
    %v561 = vunpack.c.l.b16 %v193
    %v562 = vunpack.c.h.b16 %v193
    %v563 = vunpack.c.l.b16 %v194
    %v564 = vunpack.c.h.b16 %v194
    %v565 = vunpack.c.l.b16 %v195
    %v566 = vunpack.c.h.b16 %v195
    %v567 = vunpack.c.l.b16 %v196
    %v568 = vunpack.c.h.b16 %v196
    %v569 = vunpack.c.l.b16 %v197
    %v570 = vunpack.c.h.b16 %v197
    %v571 = vunpack.c.l.b16 %v198
    %v572 = vunpack.c.h.b16 %v198
    %v573 = vunpack.c.l.b16 %v199
    %v574 = vunpack.c.h.b16 %v199
    %v575 = vunpack.c.l.b16 %v200
    %v576 = vunpack.c.h.b16 %v200
    %v577 = vunpack.c.l.b16 %v201
    %v578 = vunpack.c.h.b16 %v201
    %v579 = vunpack.c.l.b16 %v202
    %v580 = vunpack.c.h.b16 %v202
    %v581 = vunpack.c.l.b16 %v203
    %v582 = vunpack.c.h.b16 %v203
    %v583 = vunpack.c.l.b16 %v204
    %v584 = vunpack.c.h.b16 %v204
    %v585 = vunpack.c.l.b16 %v205
    %v586 = vunpack.c.h.b16 %v205
    %v587 = vunpack.c.l.b16 %v206
    %v588 = vunpack.c.h.b16 %v206
    %v589 = vunpack.c.l.b16 %v207
    %v590 = vunpack.c.h.b16 %v207
    %v591 = vunpack.c.l.b16 %v208
    %v592 = vunpack.c.h.b16 %v208
    %v593 = vunpack.c.l.b16 %v209
    %v594 = vunpack.c.h.b16 %v209
    %v595 = vunpack.c.l.b16 %v210
    %v596 = vunpack.c.h.b16 %v210
    %v597 = vunpack.c.l.b16 %v211
    %v598 = vunpack.c.h.b16 %v211
    %v599 = vunpack.c.l.b16 %v212
    %v600 = vunpack.c.h.b16 %v212
    %v601 = vunpack.c.l.b16 %v213
    %v602 = vunpack.c.h.b16 %v213
    %v603 = vunpack.c.l.b16 %v214
    %v604 = vunpack.c.h.b16 %v214
    %v605 = vunpack.c.l.b16 %v215
    %v606 = vunpack.c.h.b16 %v215
    %v607 = vunpack.c.l.b16 %v216
    %v608 = vunpack.c.h.b16 %v216
    %v609 = vunpack.c.l.b16 %v217
    %v610 = vunpack.c.h.b16 %v217
    %v611 = vunpack.c.l.b16 %v218
    %v612 = vunpack.c.h.b16 %v218
    %v613 = vunpack.c.l.b16 %v219
    %v614 = vunpack.c.h.b16 %v219
    %v615 = vunpack.c.l.b16 %v220
    %v616 = vunpack.c.h.b16 %v220
    %v617 = vunpack.c.l.b16 %v221
    %v618 = vunpack.c.h.b16 %v221
    %v619 = vunpack.c.l.b16 %v222
    %v620 = vunpack.c.h.b16 %v222
    %v621 = vunpack.c.l.b16 %v223
    %v622 = vunpack.c.h.b16 %v223
    %v623 = vpack.c.b16 %v371, %v367
    %v624 = vpack.c.b16 %v372, %v368
    %v625 = vpack.c.b16 %v373, %v369
    %v626 = vpack.c.b16 %v374, %v370
    %v627 = vpack.c.b16 %v379, %v375
    %v628 = vpack.c.b16 %v380, %v376
    %v629 = vpack.c.b16 %v381, %v377
    %v630 = vpack.c.b16 %v382, %v378
    %v631 = vpack.c.b16 %v387, %v383
    %v632 = vpack.c.b16 %v388, %v384
    %v633 = vpack.c.b16 %v389, %v385
    %v634 = vpack.c.b16 %v390, %v386
    %v635 = vpack.c.b16 %v395, %v391
    %v636 = vpack.c.b16 %v396, %v392
    %v637 = vpack.c.b16 %v397, %v393
    %v638 = vpack.c.b16 %v398, %v394
    %v639 = vpack.c.b16 %v403, %v399
    %v640 = vpack.c.b16 %v404, %v400
    %v641 = vpack.c.b16 %v405, %v401
    %v642 = vpack.c.b16 %v406, %v402
    %v643 = vpack.c.b16 %v411, %v407
    %v644 = vpack.c.b16 %v412, %v408
    %v645 = vpack.c.b16 %v413, %v409
    %v646 = vpack.c.b16 %v414, %v410
    %v647 = vpack.c.b16 %v419, %v415
    %v648 = vpack.c.b16 %v420, %v416
    %v649 = vpack.c.b16 %v421, %v417
    %v650 = vpack.c.b16 %v422, %v418
    %v651 = vpack.c.b16 %v427, %v423
    %v652 = vpack.c.b16 %v428, %v424
    %v653 = vpack.c.b16 %v429, %v425
    %v654 = vpack.c.b16 %v430, %v426
    %v655 = vpack.c.b16 %v435, %v431
    %v656 = vpack.c.b16 %v436, %v432
    %v657 = vpack.c.b16 %v437, %v433
    %v658 = vpack.c.b16 %v438, %v434
    %v659 = vpack.c.b16 %v443, %v439
    %v660 = vpack.c.b16 %v444, %v440
    %v661 = vpack.c.b16 %v445, %v441
    %v662 = vpack.c.b16 %v446, %v442
    %v663 = vpack.c.b16 %v451, %v447
    %v664 = vpack.c.b16 %v452, %v448
    %v665 = vpack.c.b16 %v453, %v449
    %v666 = vpack.c.b16 %v454, %v450
    %v667 = vpack.c.b16 %v459, %v455
    %v668 = vpack.c.b16 %v460, %v456
    %v669 = vpack.c.b16 %v461, %v457
    %v670 = vpack.c.b16 %v462, %v458
    %v671 = vpack.c.b16 %v467, %v463
    %v672 = vpack.c.b16 %v468, %v464
    %v673 = vpack.c.b16 %v469, %v465
    %v674 = vpack.c.b16 %v470, %v466
    %v675 = vpack.c.b16 %v475, %v471
    %v676 = vpack.c.b16 %v476, %v472
    %v677 = vpack.c.b16 %v477, %v473
    %v678 = vpack.c.b16 %v478, %v474
    %v679 = vpack.c.b16 %v483, %v479
    %v680 = vpack.c.b16 %v484, %v480
    %v681 = vpack.c.b16 %v485, %v481
    %v682 = vpack.c.b16 %v486, %v482
    %v683 = vpack.c.b16 %v491, %v487
    %v684 = vpack.c.b16 %v492, %v488
    %v685 = vpack.c.b16 %v493, %v489
    %v686 = vpack.c.b16 %v494, %v490
    %v687 = vpack.c.b16 %v499, %v495
    %v688 = vpack.c.b16 %v500, %v496
    %v689 = vpack.c.b16 %v501, %v497
    %v690 = vpack.c.b16 %v502, %v498
    %v691 = vpack.c.b16 %v507, %v503
    %v692 = vpack.c.b16 %v508, %v504
    %v693 = vpack.c.b16 %v509, %v505
    %v694 = vpack.c.b16 %v510, %v506
    %v695 = vpack.c.b16 %v515, %v511
    %v696 = vpack.c.b16 %v516, %v512
    %v697 = vpack.c.b16 %v517, %v513
    %v698 = vpack.c.b16 %v518, %v514
    %v699 = vpack.c.b16 %v523, %v519
    %v700 = vpack.c.b16 %v524, %v520
    %v701 = vpack.c.b16 %v525, %v521
    %v702 = vpack.c.b16 %v526, %v522
    %v703 = vpack.c.b16 %v531, %v527
    %v704 = vpack.c.b16 %v532, %v528
    %v705 = vpack.c.b16 %v533, %v529
    %v706 = vpack.c.b16 %v534, %v530
    %v707 = vpack.c.b16 %v539, %v535
    %v708 = vpack.c.b16 %v540, %v536
    %v709 = vpack.c.b16 %v541, %v537
    %v710 = vpack.c.b16 %v542, %v538
    %v711 = vpack.c.b16 %v547, %v543
    %v712 = vpack.c.b16 %v548, %v544
    %v713 = vpack.c.b16 %v549, %v545
    %v714 = vpack.c.b16 %v550, %v546
    %v715 = vpack.c.b16 %v555, %v551
    %v716 = vpack.c.b16 %v556, %v552
    %v717 = vpack.c.b16 %v557, %v553
    %v718 = vpack.c.b16 %v558, %v554
    %v719 = vpack.c.b16 %v563, %v559
    %v720 = vpack.c.b16 %v564, %v560
    %v721 = vpack.c.b16 %v565, %v561
    %v722 = vpack.c.b16 %v566, %v562
    %v723 = vpack.c.b16 %v571, %v567
    %v724 = vpack.c.b16 %v572, %v568
    %v725 = vpack.c.b16 %v573, %v569
    %v726 = vpack.c.b16 %v574, %v570
    %v727 = vpack.c.b16 %v579, %v575
    %v728 = vpack.c.b16 %v580, %v576
    %v729 = vpack.c.b16 %v581, %v577
    %v730 = vpack.c.b16 %v582, %v578
    %v731 = vpack.c.b16 %v587, %v583
    %v732 = vpack.c.b16 %v588, %v584
    %v733 = vpack.c.b16 %v589, %v585
    %v734 = vpack.c.b16 %v590, %v586
    %v735 = vpack.c.b16 %v595, %v591
    %v736 = vpack.c.b16 %v596, %v592
    %v737 = vpack.c.b16 %v597, %v593
    %v738 = vpack.c.b16 %v598, %v594
    %v739 = vpack.c.b16 %v603, %v599
    %v740 = vpack.c.b16 %v604, %v600
    %v741 = vpack.c.b16 %v605, %v601
    %v742 = vpack.c.b16 %v606, %v602
    %v743 = vpack.c.b16 %v611, %v607
    %v744 = vpack.c.b16 %v612, %v608
    %v745 = vpack.c.b16 %v613, %v609
    %v746 = vpack.c.b16 %v614, %v610
    %v747 = vpack.c.b16 %v619, %v615
    %v748 = vpack.c.b16 %v620, %v616
    %v749 = vpack.c.b16 %v621, %v617
    %v750 = vpack.c.b16 %v622, %v618
    %v880 = vperm.slane %v224, 0
    %v881 = vperm.slane %v224, 1
    %v882 = vperm.slane %v224, 2
    %v883 = vperm.slane %v224, 3
    %888 = vmatpush.bf16.msra.mxu0 %v651
    %889 = vmatpush.bf16.msra.mxu0 %v647
    %890 = vmatpush.bf16.msra.mxu0 %v643
    %891 = vmatpush.bf16.msra.mxu0 %v639
    %892 = vmatpush.bf16.msra.mxu0 %v635
    %893 = vmatpush.bf16.msra.mxu0 %v631
    %894 = vmatpush.bf16.msra.mxu0 %v627
    %895 = vmatpush.bf16.msra.mxu0 %v623
    %896 = vmatmul.bf16.gmra.mxu0 %v235
    %v897 = vpop.f32.mrf.mxu0
    %v898 = vadd.f32 %v880, %v897
    %v899 = vpop.f32.mrf.mxu0
    %900 = vdwg.mxu0
    %901 = vmatpush.bf16.msra.mxu0 %v683
    %902 = vmatpush.bf16.msra.mxu0 %v679
    %903 = vmatpush.bf16.msra.mxu0 %v675
    %904 = vmatpush.bf16.msra.mxu0 %v671
    %905 = vmatpush.bf16.msra.mxu0 %v667
    %906 = vmatpush.bf16.msra.mxu0 %v663
    %907 = vmatpush.bf16.msra.mxu0 %v659
    %908 = vmatpush.bf16.msra.mxu0 %v655
    %909 = vmatmul.bf16.gmra.mxu0 %v236
    %v910 = vpop.f32.mrf.mxu0
    %v911 = vadd.f32 %v898, %v910
    %v912 = vpop.f32.mrf.mxu0
    %913 = vdwg.mxu0
    %914 = vmatpush.bf16.msra.mxu0 %v715
    %915 = vmatpush.bf16.msra.mxu0 %v711
    %916 = vmatpush.bf16.msra.mxu0 %v707
    %917 = vmatpush.bf16.msra.mxu0 %v703
    %918 = vmatpush.bf16.msra.mxu0 %v699
    %919 = vmatpush.bf16.msra.mxu0 %v695
    %920 = vmatpush.bf16.msra.mxu0 %v691
    %921 = vmatpush.bf16.msra.mxu0 %v687
    %922 = vmatmul.bf16.gmra.mxu0 %v237
    %v923 = vpop.f32.mrf.mxu0
    %v924 = vadd.f32 %v911, %v923
    %v925 = vpop.f32.mrf.mxu0
    %926 = vdwg.mxu0
    %927 = vmatpush.bf16.msra.mxu0 %v747
    %928 = vmatpush.bf16.msra.mxu0 %v743
    %929 = vmatpush.bf16.msra.mxu0 %v739
    %930 = vmatpush.bf16.msra.mxu0 %v735
    %931 = vmatpush.bf16.msra.mxu0 %v731
    %932 = vmatpush.bf16.msra.mxu0 %v727
    %933 = vmatpush.bf16.msra.mxu0 %v723
    %934 = vmatpush.bf16.msra.mxu0 %v719
    %935 = vmatmul.bf16.gmra.mxu0 %v238
    %v936 = vpop.f32.mrf.mxu0
    %v937 = vadd.f32 %v924, %v936
    %v938 = vpop.f32.mrf.mxu0
    %939 = vdwg.mxu0
    %940 = vmatpush.bf16.msra.mxu0 %v652
    %941 = vmatpush.bf16.msra.mxu0 %v648
    %942 = vmatpush.bf16.msra.mxu0 %v644
    %943 = vmatpush.bf16.msra.mxu0 %v640
    %944 = vmatpush.bf16.msra.mxu0 %v636
    %945 = vmatpush.bf16.msra.mxu0 %v632
    %946 = vmatpush.bf16.msra.mxu0 %v628
    %947 = vmatpush.bf16.msra.mxu0 %v624
    %948 = vmatmul.bf16.gmra.mxu0 %v235
    %v949 = vpop.f32.mrf.mxu0
    %v950 = vadd.f32 %v881, %v949
    %v951 = vpop.f32.mrf.mxu0
    %952 = vdwg.mxu0
    %953 = vmatpush.bf16.msra.mxu0 %v684
    %954 = vmatpush.bf16.msra.mxu0 %v680
    %955 = vmatpush.bf16.msra.mxu0 %v676
    %956 = vmatpush.bf16.msra.mxu0 %v672
    %957 = vmatpush.bf16.msra.mxu0 %v668
    %958 = vmatpush.bf16.msra.mxu0 %v664
    %959 = vmatpush.bf16.msra.mxu0 %v660
    %960 = vmatpush.bf16.msra.mxu0 %v656
    %961 = vmatmul.bf16.gmra.mxu0 %v236
    %v962 = vpop.f32.mrf.mxu0
    %v963 = vadd.f32 %v950, %v962
    %v964 = vpop.f32.mrf.mxu0
    %965 = vdwg.mxu0
    %966 = vmatpush.bf16.msra.mxu0 %v716
    %967 = vmatpush.bf16.msra.mxu0 %v712
    %968 = vmatpush.bf16.msra.mxu0 %v708
    %969 = vmatpush.bf16.msra.mxu0 %v704
    %970 = vmatpush.bf16.msra.mxu0 %v700
    %971 = vmatpush.bf16.msra.mxu0 %v696
    %972 = vmatpush.bf16.msra.mxu0 %v692
    %973 = vmatpush.bf16.msra.mxu0 %v688
    %974 = vmatmul.bf16.gmra.mxu0 %v237
    %v975 = vpop.f32.mrf.mxu0
    %v976 = vadd.f32 %v963, %v975
    %v977 = vpop.f32.mrf.mxu0
    %978 = vdwg.mxu0
    %979 = vmatpush.bf16.msra.mxu0 %v748
    %980 = vmatpush.bf16.msra.mxu0 %v744
    %981 = vmatpush.bf16.msra.mxu0 %v740
    %982 = vmatpush.bf16.msra.mxu0 %v736
    %983 = vmatpush.bf16.msra.mxu0 %v732
    %984 = vmatpush.bf16.msra.mxu0 %v728
    %985 = vmatpush.bf16.msra.mxu0 %v724
    %986 = vmatpush.bf16.msra.mxu0 %v720
    %987 = vmatmul.bf16.gmra.mxu0 %v238
    %v988 = vpop.f32.mrf.mxu0
    %v989 = vadd.f32 %v976, %v988
    %v990 = vpop.f32.mrf.mxu0
    %991 = vdwg.mxu0
    %992 = vmatpush.bf16.msra.mxu0 %v653
    %993 = vmatpush.bf16.msra.mxu0 %v649
    %994 = vmatpush.bf16.msra.mxu0 %v645
    %995 = vmatpush.bf16.msra.mxu0 %v641
    %996 = vmatpush.bf16.msra.mxu0 %v637
    %997 = vmatpush.bf16.msra.mxu0 %v633
    %998 = vmatpush.bf16.msra.mxu0 %v629
    %999 = vmatpush.bf16.msra.mxu0 %v625
    %1000 = vmatmul.bf16.gmra.mxu0 %v235
    %v1001 = vpop.f32.mrf.mxu0
    %v1002 = vadd.f32 %v882, %v1001
    %v1003 = vpop.f32.mrf.mxu0
    %1004 = vdwg.mxu0
    %1005 = vmatpush.bf16.msra.mxu0 %v685
    %1006 = vmatpush.bf16.msra.mxu0 %v681
    %1007 = vmatpush.bf16.msra.mxu0 %v677
    %1008 = vmatpush.bf16.msra.mxu0 %v673
    %1009 = vmatpush.bf16.msra.mxu0 %v669
    %1010 = vmatpush.bf16.msra.mxu0 %v665
    %1011 = vmatpush.bf16.msra.mxu0 %v661
    %1012 = vmatpush.bf16.msra.mxu0 %v657
    %1013 = vmatmul.bf16.gmra.mxu0 %v236
    %v1014 = vpop.f32.mrf.mxu0
    %v1015 = vadd.f32 %v1002, %v1014
    %v1016 = vpop.f32.mrf.mxu0
    %1017 = vdwg.mxu0
    %1018 = vmatpush.bf16.msra.mxu0 %v717
    %1019 = vmatpush.bf16.msra.mxu0 %v713
    %1020 = vmatpush.bf16.msra.mxu0 %v709
    %1021 = vmatpush.bf16.msra.mxu0 %v705
    %1022 = vmatpush.bf16.msra.mxu0 %v701
    %1023 = vmatpush.bf16.msra.mxu0 %v697
    %1024 = vmatpush.bf16.msra.mxu0 %v693
    %1025 = vmatpush.bf16.msra.mxu0 %v689
    %1026 = vmatmul.bf16.gmra.mxu0 %v237
    %v1027 = vpop.f32.mrf.mxu0
    %v1028 = vadd.f32 %v1015, %v1027
    %v1029 = vpop.f32.mrf.mxu0
    %1030 = vdwg.mxu0
    %1031 = vmatpush.bf16.msra.mxu0 %v749
    %1032 = vmatpush.bf16.msra.mxu0 %v745
    %1033 = vmatpush.bf16.msra.mxu0 %v741
    %1034 = vmatpush.bf16.msra.mxu0 %v737
    %1035 = vmatpush.bf16.msra.mxu0 %v733
    %1036 = vmatpush.bf16.msra.mxu0 %v729
    %1037 = vmatpush.bf16.msra.mxu0 %v725
    %1038 = vmatpush.bf16.msra.mxu0 %v721
    %1039 = vmatmul.bf16.gmra.mxu0 %v238
    %v1040 = vpop.f32.mrf.mxu0
    %v1041 = vadd.f32 %v1028, %v1040
    %v1042 = vpop.f32.mrf.mxu0
    %1043 = vdwg.mxu0
    %1044 = vmatpush.bf16.msra.mxu0 %v654
    %1045 = vmatpush.bf16.msra.mxu0 %v650
    %1046 = vmatpush.bf16.msra.mxu0 %v646
    %1047 = vmatpush.bf16.msra.mxu0 %v642
    %1048 = vmatpush.bf16.msra.mxu0 %v638
    %1049 = vmatpush.bf16.msra.mxu0 %v634
    %1050 = vmatpush.bf16.msra.mxu0 %v630
    %1051 = vmatpush.bf16.msra.mxu0 %v626
    %1052 = vmatmul.bf16.gmra.mxu0 %v235
    %v1053 = vpop.f32.mrf.mxu0
    %v1054 = vadd.f32 %v883, %v1053
    %v1055 = vpop.f32.mrf.mxu0
    %1056 = vdwg.mxu0
    %1057 = vmatpush.bf16.msra.mxu0 %v686
    %1058 = vmatpush.bf16.msra.mxu0 %v682
    %1059 = vmatpush.bf16.msra.mxu0 %v678
    %1060 = vmatpush.bf16.msra.mxu0 %v674
    %1061 = vmatpush.bf16.msra.mxu0 %v670
    %1062 = vmatpush.bf16.msra.mxu0 %v666
    %1063 = vmatpush.bf16.msra.mxu0 %v662
    %1064 = vmatpush.bf16.msra.mxu0 %v658
    %1065 = vmatmul.bf16.gmra.mxu0 %v236
    %v1066 = vpop.f32.mrf.mxu0
    %v1067 = vadd.f32 %v1054, %v1066
    %v1068 = vpop.f32.mrf.mxu0
    %1069 = vdwg.mxu0
    %1070 = vmatpush.bf16.msra.mxu0 %v718
    %1071 = vmatpush.bf16.msra.mxu0 %v714
    %1072 = vmatpush.bf16.msra.mxu0 %v710
    %1073 = vmatpush.bf16.msra.mxu0 %v706
    %1074 = vmatpush.bf16.msra.mxu0 %v702
    %1075 = vmatpush.bf16.msra.mxu0 %v698
    %1076 = vmatpush.bf16.msra.mxu0 %v694
    %1077 = vmatpush.bf16.msra.mxu0 %v690
    %1078 = vmatmul.bf16.gmra.mxu0 %v237
    %v1079 = vpop.f32.mrf.mxu0
    %v1080 = vadd.f32 %v1067, %v1079
    %v1081 = vpop.f32.mrf.mxu0
    %1082 = vdwg.mxu0
    %1083 = vmatpush.bf16.msra.mxu0 %v750
    %1084 = vmatpush.bf16.msra.mxu0 %v746
    %1085 = vmatpush.bf16.msra.mxu0 %v742
    %1086 = vmatpush.bf16.msra.mxu0 %v738
    %1087 = vmatpush.bf16.msra.mxu0 %v734
    %1088 = vmatpush.bf16.msra.mxu0 %v730
    %1089 = vmatpush.bf16.msra.mxu0 %v726
    %1090 = vmatpush.bf16.msra.mxu0 %v722
    %1091 = vmatmul.bf16.gmra.mxu0 %v238
    %v1092 = vpop.f32.mrf.mxu0
    %v1093 = vadd.f32 %v1080, %v1092
    %v1094 = vpop.f32.mrf.mxu0
    %1095 = vdwg.mxu0
    %v1096 = vmul.f32 %v937, 16.0
    %v1097 = vmul.f32 %v989, 16.0
    %v1098 = vmul.f32 %v1041, 16.0
    %v1099 = vmul.f32 %v1093, 16.0
    %v1100 = vld [vmem:[#allocation9 + $0x10] sm:$0xff]
    %v1101 = vld [vmem:[#allocation9 + $0x18] sm:$0xff]
    %v1102 = vld [vmem:[#allocation9 + $0x40] sm:$0xff]
    %v1103 = vld [vmem:[#allocation9 + $0x48] sm:$0xff]
    %v1104 = vld [vmem:[#allocation9 + $0x70] sm:$0xff]
    %v1105 = vld [vmem:[#allocation9 + $0x78] sm:$0xff]
    %v1106 = vld [vmem:[#allocation9 + $0xa0] sm:$0xff]
    %v1107 = vld [vmem:[#allocation9 + $0xa8] sm:$0xff]
    %v1108 = vld [vmem:[#allocation9 + $0xd0] sm:$0xff]
    %v1109 = vld [vmem:[#allocation9 + $0xd8] sm:$0xff]
    %v1110 = vld [vmem:[#allocation9 + $0x100] sm:$0xff]
    %v1111 = vld [vmem:[#allocation9 + $0x108] sm:$0xff]
    %v1112 = vld [vmem:[#allocation9 + $0x130] sm:$0xff]
    %v1113 = vld [vmem:[#allocation9 + $0x138] sm:$0xff]
    %v1114 = vld [vmem:[#allocation9 + $0x160] sm:$0xff]
    %v1115 = vld [vmem:[#allocation9 + $0x168] sm:$0xff]
    %v1116 = vld [vmem:[#allocation9 + $0x190] sm:$0xff]
    %v1117 = vld [vmem:[#allocation9 + $0x198] sm:$0xff]
    %v1118 = vld [vmem:[#allocation9 + $0x1c0] sm:$0xff]
    %v1119 = vld [vmem:[#allocation9 + $0x1c8] sm:$0xff]
    %v1120 = vld [vmem:[#allocation9 + $0x1f0] sm:$0xff]
    %v1121 = vld [vmem:[#allocation9 + $0x1f8] sm:$0xff]
    %v1122 = vld [vmem:[#allocation9 + $0x220] sm:$0xff]
    %v1123 = vld [vmem:[#allocation9 + $0x228] sm:$0xff]
    %v1124 = vld [vmem:[#allocation9 + $0x250] sm:$0xff]
    %v1125 = vld [vmem:[#allocation9 + $0x258] sm:$0xff]
    %v1126 = vld [vmem:[#allocation9 + $0x280] sm:$0xff]
    %v1127 = vld [vmem:[#allocation9 + $0x288] sm:$0xff]
    %v1128 = vld [vmem:[#allocation9 + $0x2b0] sm:$0xff]
    %v1129 = vld [vmem:[#allocation9 + $0x2b8] sm:$0xff]
    %v1130 = vld [vmem:[#allocation9 + $0x2e0] sm:$0xff]
    %v1131 = vld [vmem:[#allocation9 + $0x2e8] sm:$0xff]
    %v1132 = vld [vmem:[#allocation9 + $0x310] sm:$0xff]
    %v1133 = vld [vmem:[#allocation9 + $0x318] sm:$0xff]
    %v1134 = vld [vmem:[#allocation9 + $0x340] sm:$0xff]
    %v1135 = vld [vmem:[#allocation9 + $0x348] sm:$0xff]
    %v1136 = vld [vmem:[#allocation9 + $0x370] sm:$0xff]
    %v1137 = vld [vmem:[#allocation9 + $0x378] sm:$0xff]
    %v1138 = vld [vmem:[#allocation9 + $0x3a0] sm:$0xff]
    %v1139 = vld [vmem:[#allocation9 + $0x3a8] sm:$0xff]
    %v1140 = vld [vmem:[#allocation9 + $0x3d0] sm:$0xff]
    %v1141 = vld [vmem:[#allocation9 + $0x3d8] sm:$0xff]
    %v1142 = vld [vmem:[#allocation9 + $0x400] sm:$0xff]
    %v1143 = vld [vmem:[#allocation9 + $0x408] sm:$0xff]
    %v1144 = vld [vmem:[#allocation9 + $0x430] sm:$0xff]
    %v1145 = vld [vmem:[#allocation9 + $0x438] sm:$0xff]
    %v1146 = vld [vmem:[#allocation9 + $0x460] sm:$0xff]
    %v1147 = vld [vmem:[#allocation9 + $0x468] sm:$0xff]
    %v1148 = vld [vmem:[#allocation9 + $0x490] sm:$0xff]
    %v1149 = vld [vmem:[#allocation9 + $0x498] sm:$0xff]
    %v1150 = vld [vmem:[#allocation9 + $0x4c0] sm:$0xff]
    %v1151 = vld [vmem:[#allocation9 + $0x4c8] sm:$0xff]
    %v1152 = vld [vmem:[#allocation9 + $0x4f0] sm:$0xff]
    %v1153 = vld [vmem:[#allocation9 + $0x4f8] sm:$0xff]
    %v1154 = vld [vmem:[#allocation9 + $0x520] sm:$0xff]
    %v1155 = vld [vmem:[#allocation9 + $0x528] sm:$0xff]
    %v1156 = vld [vmem:[#allocation9 + $0x550] sm:$0xff]
    %v1157 = vld [vmem:[#allocation9 + $0x558] sm:$0xff]
    %v1158 = vld [vmem:[#allocation9 + $0x580] sm:$0xff]
    %v1159 = vld [vmem:[#allocation9 + $0x588] sm:$0xff]
    %v1160 = vld [vmem:[#allocation9 + $0x5b0] sm:$0xff]
    %v1161 = vld [vmem:[#allocation9 + $0x5b8] sm:$0xff]
    %v1162 = vld [vmem:[#allocation9 + $0x5e0] sm:$0xff]
    %v1163 = vld [vmem:[#allocation9 + $0x5e8] sm:$0xff]
    %v1164 = vld [vmem:[#allocation9 + $0x610] sm:$0xff]
    %v1165 = vld [vmem:[#allocation9 + $0x618] sm:$0xff]
    %v1166 = vld [vmem:[#allocation9 + $0x640] sm:$0xff]
    %v1167 = vld [vmem:[#allocation9 + $0x648] sm:$0xff]
    %v1168 = vld [vmem:[#allocation9 + $0x670] sm:$0xff]
    %v1169 = vld [vmem:[#allocation9 + $0x678] sm:$0xff]
    %v1170 = vld [vmem:[#allocation9 + $0x6a0] sm:$0xff]
    %v1171 = vld [vmem:[#allocation9 + $0x6a8] sm:$0xff]
    %v1172 = vld [vmem:[#allocation9 + $0x6d0] sm:$0xff]
    %v1173 = vld [vmem:[#allocation9 + $0x6d8] sm:$0xff]
    %v1174 = vld [vmem:[#allocation9 + $0x700] sm:$0xff]
    %v1175 = vld [vmem:[#allocation9 + $0x708] sm:$0xff]
    %v1176 = vld [vmem:[#allocation9 + $0x730] sm:$0xff]
    %v1177 = vld [vmem:[#allocation9 + $0x738] sm:$0xff]
    %v1178 = vld [vmem:[#allocation9 + $0x760] sm:$0xff]
    %v1179 = vld [vmem:[#allocation9 + $0x768] sm:$0xff]
    %v1180 = vld [vmem:[#allocation9 + $0x790] sm:$0xff]
    %v1181 = vld [vmem:[#allocation9 + $0x798] sm:$0xff]
    %v1182 = vld [vmem:[#allocation9 + $0x7c0] sm:$0xff]
    %v1183 = vld [vmem:[#allocation9 + $0x7c8] sm:$0xff]
    %v1184 = vld [vmem:[#allocation9 + $0x7f0] sm:$0xff]
    %v1185 = vld [vmem:[#allocation9 + $0x7f8] sm:$0xff]
    %v1186 = vld [vmem:[#allocation9 + $0x820] sm:$0xff]
    %v1187 = vld [vmem:[#allocation9 + $0x828] sm:$0xff]
    %v1188 = vld [vmem:[#allocation9 + $0x850] sm:$0xff]
    %v1189 = vld [vmem:[#allocation9 + $0x858] sm:$0xff]
    %v1190 = vld [vmem:[#allocation9 + $0x880] sm:$0xff]
    %v1191 = vld [vmem:[#allocation9 + $0x888] sm:$0xff]
    %v1192 = vld [vmem:[#allocation9 + $0x8b0] sm:$0xff]
    %v1193 = vld [vmem:[#allocation9 + $0x8b8] sm:$0xff]
    %v1194 = vld [vmem:[#allocation9 + $0x8e0] sm:$0xff]
    %v1195 = vld [vmem:[#allocation9 + $0x8e8] sm:$0xff]
    %v1196 = vld [vmem:[#allocation9 + $0x910] sm:$0xff]
    %v1197 = vld [vmem:[#allocation9 + $0x918] sm:$0xff]
    %v1198 = vld [vmem:[#allocation9 + $0x940] sm:$0xff]
    %v1199 = vld [vmem:[#allocation9 + $0x948] sm:$0xff]
    %v1200 = vld [vmem:[#allocation9 + $0x970] sm:$0xff]
    %v1201 = vld [vmem:[#allocation9 + $0x978] sm:$0xff]
    %v1202 = vld [vmem:[#allocation9 + $0x9a0] sm:$0xff]
    %v1203 = vld [vmem:[#allocation9 + $0x9a8] sm:$0xff]
    %v1204 = vld [vmem:[#allocation9 + $0x9d0] sm:$0xff]
    %v1205 = vld [vmem:[#allocation9 + $0x9d8] sm:$0xff]
    %v1206 = vld [vmem:[#allocation9 + $0xa00] sm:$0xff]
    %v1207 = vld [vmem:[#allocation9 + $0xa08] sm:$0xff]
    %v1208 = vld [vmem:[#allocation9 + $0xa30] sm:$0xff]
    %v1209 = vld [vmem:[#allocation9 + $0xa38] sm:$0xff]
    %v1210 = vld [vmem:[#allocation9 + $0xa60] sm:$0xff]
    %v1211 = vld [vmem:[#allocation9 + $0xa68] sm:$0xff]
    %v1212 = vld [vmem:[#allocation9 + $0xa90] sm:$0xff]
    %v1213 = vld [vmem:[#allocation9 + $0xa98] sm:$0xff]
    %v1214 = vld [vmem:[#allocation9 + $0xac0] sm:$0xff]
    %v1215 = vld [vmem:[#allocation9 + $0xac8] sm:$0xff]
    %v1216 = vld [vmem:[#allocation9 + $0xaf0] sm:$0xff]
    %v1217 = vld [vmem:[#allocation9 + $0xaf8] sm:$0xff]
    %v1218 = vld [vmem:[#allocation9 + $0xb20] sm:$0xff]
    %v1219 = vld [vmem:[#allocation9 + $0xb28] sm:$0xff]
    %v1220 = vld [vmem:[#allocation9 + $0xb50] sm:$0xff]
    %v1221 = vld [vmem:[#allocation9 + $0xb58] sm:$0xff]
    %v1222 = vld [vmem:[#allocation9 + $0xb80] sm:$0xff]
    %v1223 = vld [vmem:[#allocation9 + $0xb88] sm:$0xff]
    %v1224 = vld [vmem:[#allocation9 + $0xbb0] sm:$0xff]
    %v1225 = vld [vmem:[#allocation9 + $0xbb8] sm:$0xff]
    %v1226 = vld [vmem:[#allocation9 + $0xbe0] sm:$0xff]
    %v1227 = vld [vmem:[#allocation9 + $0xbe8] sm:$0xff]
    %v1228 = vld [vmem:[#allocation11 + $0x4] sm:$0xf]
    %v1229 = vld [vmem:[#allocation6] sm:$0xf]
    %v1231 = vperm.slane %v1229, 0
    %v1232 = vperm.slane %v1229, 1
    %v1233 = vperm.slane %v1229, 2
    %v1234 = vperm.slane %v1229, 3
    %v1239 = vpack.c.bf16 %v1231, %v1231
    %v1240 = vpack.c.bf16 %v1232, %v1232
    %v1241 = vpack.c.bf16 %v1233, %v1233
    %v1242 = vpack.c.bf16 %v1234, %v1234
    %v1371 = vunpack.c.l.b16 %v1100
    %v1372 = vunpack.c.h.b16 %v1100
    %v1373 = vunpack.c.l.b16 %v1101
    %v1374 = vunpack.c.h.b16 %v1101
    %v1375 = vunpack.c.l.b16 %v1102
    %v1376 = vunpack.c.h.b16 %v1102
    %v1377 = vunpack.c.l.b16 %v1103
    %v1378 = vunpack.c.h.b16 %v1103
    %v1379 = vunpack.c.l.b16 %v1104
    %v1380 = vunpack.c.h.b16 %v1104
    %v1381 = vunpack.c.l.b16 %v1105
    %v1382 = vunpack.c.h.b16 %v1105
    %v1383 = vunpack.c.l.b16 %v1106
    %v1384 = vunpack.c.h.b16 %v1106
    %v1385 = vunpack.c.l.b16 %v1107
    %v1386 = vunpack.c.h.b16 %v1107
    %v1387 = vunpack.c.l.b16 %v1108
    %v1388 = vunpack.c.h.b16 %v1108
    %v1389 = vunpack.c.l.b16 %v1109
    %v1390 = vunpack.c.h.b16 %v1109
    %v1391 = vunpack.c.l.b16 %v1110
    %v1392 = vunpack.c.h.b16 %v1110
    %v1393 = vunpack.c.l.b16 %v1111
    %v1394 = vunpack.c.h.b16 %v1111
    %v1395 = vunpack.c.l.b16 %v1112
    %v1396 = vunpack.c.h.b16 %v1112
    %v1397 = vunpack.c.l.b16 %v1113
    %v1398 = vunpack.c.h.b16 %v1113
    %v1399 = vunpack.c.l.b16 %v1114
    %v1400 = vunpack.c.h.b16 %v1114
    %v1401 = vunpack.c.l.b16 %v1115
    %v1402 = vunpack.c.h.b16 %v1115
    %v1403 = vunpack.c.l.b16 %v1116
    %v1404 = vunpack.c.h.b16 %v1116
    %v1405 = vunpack.c.l.b16 %v1117
    %v1406 = vunpack.c.h.b16 %v1117
    %v1407 = vunpack.c.l.b16 %v1118
    %v1408 = vunpack.c.h.b16 %v1118
    %v1409 = vunpack.c.l.b16 %v1119
    %v1410 = vunpack.c.h.b16 %v1119
    %v1411 = vunpack.c.l.b16 %v1120
    %v1412 = vunpack.c.h.b16 %v1120
    %v1413 = vunpack.c.l.b16 %v1121
    %v1414 = vunpack.c.h.b16 %v1121
    %v1415 = vunpack.c.l.b16 %v1122
    %v1416 = vunpack.c.h.b16 %v1122
    %v1417 = vunpack.c.l.b16 %v1123
    %v1418 = vunpack.c.h.b16 %v1123
    %v1419 = vunpack.c.l.b16 %v1124
    %v1420 = vunpack.c.h.b16 %v1124
    %v1421 = vunpack.c.l.b16 %v1125
    %v1422 = vunpack.c.h.b16 %v1125
    %v1423 = vunpack.c.l.b16 %v1126
    %v1424 = vunpack.c.h.b16 %v1126
    %v1425 = vunpack.c.l.b16 %v1127
    %v1426 = vunpack.c.h.b16 %v1127
    %v1427 = vunpack.c.l.b16 %v1128
    %v1428 = vunpack.c.h.b16 %v1128
    %v1429 = vunpack.c.l.b16 %v1129
    %v1430 = vunpack.c.h.b16 %v1129
    %v1431 = vunpack.c.l.b16 %v1130
    %v1432 = vunpack.c.h.b16 %v1130
    %v1433 = vunpack.c.l.b16 %v1131
    %v1434 = vunpack.c.h.b16 %v1131
    %v1435 = vunpack.c.l.b16 %v1132
    %v1436 = vunpack.c.h.b16 %v1132
    %v1437 = vunpack.c.l.b16 %v1133
    %v1438 = vunpack.c.h.b16 %v1133
    %v1439 = vunpack.c.l.b16 %v1134
    %v1440 = vunpack.c.h.b16 %v1134
    %v1441 = vunpack.c.l.b16 %v1135
    %v1442 = vunpack.c.h.b16 %v1135
    %v1443 = vunpack.c.l.b16 %v1136
    %v1444 = vunpack.c.h.b16 %v1136
    %v1445 = vunpack.c.l.b16 %v1137
    %v1446 = vunpack.c.h.b16 %v1137
    %v1447 = vunpack.c.l.b16 %v1138
    %v1448 = vunpack.c.h.b16 %v1138
    %v1449 = vunpack.c.l.b16 %v1139
    %v1450 = vunpack.c.h.b16 %v1139
    %v1451 = vunpack.c.l.b16 %v1140
    %v1452 = vunpack.c.h.b16 %v1140
    %v1453 = vunpack.c.l.b16 %v1141
    %v1454 = vunpack.c.h.b16 %v1141
    %v1455 = vunpack.c.l.b16 %v1142
    %v1456 = vunpack.c.h.b16 %v1142
    %v1457 = vunpack.c.l.b16 %v1143
    %v1458 = vunpack.c.h.b16 %v1143
    %v1459 = vunpack.c.l.b16 %v1144
    %v1460 = vunpack.c.h.b16 %v1144
    %v1461 = vunpack.c.l.b16 %v1145
    %v1462 = vunpack.c.h.b16 %v1145
    %v1463 = vunpack.c.l.b16 %v1146
    %v1464 = vunpack.c.h.b16 %v1146
    %v1465 = vunpack.c.l.b16 %v1147
    %v1466 = vunpack.c.h.b16 %v1147
    %v1467 = vunpack.c.l.b16 %v1148
    %v1468 = vunpack.c.h.b16 %v1148
    %v1469 = vunpack.c.l.b16 %v1149
    %v1470 = vunpack.c.h.b16 %v1149
    %v1471 = vunpack.c.l.b16 %v1150
    %v1472 = vunpack.c.h.b16 %v1150
    %v1473 = vunpack.c.l.b16 %v1151
    %v1474 = vunpack.c.h.b16 %v1151
    %v1475 = vunpack.c.l.b16 %v1152
    %v1476 = vunpack.c.h.b16 %v1152
    %v1477 = vunpack.c.l.b16 %v1153
    %v1478 = vunpack.c.h.b16 %v1153
    %v1479 = vunpack.c.l.b16 %v1154
    %v1480 = vunpack.c.h.b16 %v1154
    %v1481 = vunpack.c.l.b16 %v1155
    %v1482 = vunpack.c.h.b16 %v1155
    %v1483 = vunpack.c.l.b16 %v1156
    %v1484 = vunpack.c.h.b16 %v1156
    %v1485 = vunpack.c.l.b16 %v1157
    %v1486 = vunpack.c.h.b16 %v1157
    %v1487 = vunpack.c.l.b16 %v1158
    %v1488 = vunpack.c.h.b16 %v1158
    %v1489 = vunpack.c.l.b16 %v1159
    %v1490 = vunpack.c.h.b16 %v1159
    %v1491 = vunpack.c.l.b16 %v1160
    %v1492 = vunpack.c.h.b16 %v1160
    %v1493 = vunpack.c.l.b16 %v1161
    %v1494 = vunpack.c.h.b16 %v1161
    %v1495 = vunpack.c.l.b16 %v1162
    %v1496 = vunpack.c.h.b16 %v1162
    %v1497 = vunpack.c.l.b16 %v1163
    %v1498 = vunpack.c.h.b16 %v1163
    %v1499 = vunpack.c.l.b16 %v1164
    %v1500 = vunpack.c.h.b16 %v1164
    %v1501 = vunpack.c.l.b16 %v1165
    %v1502 = vunpack.c.h.b16 %v1165
    %v1503 = vunpack.c.l.b16 %v1166
    %v1504 = vunpack.c.h.b16 %v1166
    %v1505 = vunpack.c.l.b16 %v1167
    %v1506 = vunpack.c.h.b16 %v1167
    %v1507 = vunpack.c.l.b16 %v1168
    %v1508 = vunpack.c.h.b16 %v1168
    %v1509 = vunpack.c.l.b16 %v1169
    %v1510 = vunpack.c.h.b16 %v1169
    %v1511 = vunpack.c.l.b16 %v1170
    %v1512 = vunpack.c.h.b16 %v1170
    %v1513 = vunpack.c.l.b16 %v1171
    %v1514 = vunpack.c.h.b16 %v1171
    %v1515 = vunpack.c.l.b16 %v1172
    %v1516 = vunpack.c.h.b16 %v1172
    %v1517 = vunpack.c.l.b16 %v1173
    %v1518 = vunpack.c.h.b16 %v1173
    %v1519 = vunpack.c.l.b16 %v1174
    %v1520 = vunpack.c.h.b16 %v1174
    %v1521 = vunpack.c.l.b16 %v1175
    %v1522 = vunpack.c.h.b16 %v1175
    %v1523 = vunpack.c.l.b16 %v1176
    %v1524 = vunpack.c.h.b16 %v1176
    %v1525 = vunpack.c.l.b16 %v1177
    %v1526 = vunpack.c.h.b16 %v1177
    %v1527 = vunpack.c.l.b16 %v1178
    %v1528 = vunpack.c.h.b16 %v1178
    %v1529 = vunpack.c.l.b16 %v1179
    %v1530 = vunpack.c.h.b16 %v1179
    %v1531 = vunpack.c.l.b16 %v1180
    %v1532 = vunpack.c.h.b16 %v1180
    %v1533 = vunpack.c.l.b16 %v1181
    %v1534 = vunpack.c.h.b16 %v1181
    %v1535 = vunpack.c.l.b16 %v1182
    %v1536 = vunpack.c.h.b16 %v1182
    %v1537 = vunpack.c.l.b16 %v1183
    %v1538 = vunpack.c.h.b16 %v1183
    %v1539 = vunpack.c.l.b16 %v1184
    %v1540 = vunpack.c.h.b16 %v1184
    %v1541 = vunpack.c.l.b16 %v1185
    %v1542 = vunpack.c.h.b16 %v1185
    %v1543 = vunpack.c.l.b16 %v1186
    %v1544 = vunpack.c.h.b16 %v1186
    %v1545 = vunpack.c.l.b16 %v1187
    %v1546 = vunpack.c.h.b16 %v1187
    %v1547 = vunpack.c.l.b16 %v1188
    %v1548 = vunpack.c.h.b16 %v1188
    %v1549 = vunpack.c.l.b16 %v1189
    %v1550 = vunpack.c.h.b16 %v1189
    %v1551 = vunpack.c.l.b16 %v1190
    %v1552 = vunpack.c.h.b16 %v1190
    %v1553 = vunpack.c.l.b16 %v1191
    %v1554 = vunpack.c.h.b16 %v1191
    %v1555 = vunpack.c.l.b16 %v1192
    %v1556 = vunpack.c.h.b16 %v1192
    %v1557 = vunpack.c.l.b16 %v1193
    %v1558 = vunpack.c.h.b16 %v1193
    %v1559 = vunpack.c.l.b16 %v1194
    %v1560 = vunpack.c.h.b16 %v1194
    %v1561 = vunpack.c.l.b16 %v1195
    %v1562 = vunpack.c.h.b16 %v1195
    %v1563 = vunpack.c.l.b16 %v1196
    %v1564 = vunpack.c.h.b16 %v1196
    %v1565 = vunpack.c.l.b16 %v1197
    %v1566 = vunpack.c.h.b16 %v1197
    %v1567 = vunpack.c.l.b16 %v1198
    %v1568 = vunpack.c.h.b16 %v1198
    %v1569 = vunpack.c.l.b16 %v1199
    %v1570 = vunpack.c.h.b16 %v1199
    %v1571 = vunpack.c.l.b16 %v1200
    %v1572 = vunpack.c.h.b16 %v1200
    %v1573 = vunpack.c.l.b16 %v1201
    %v1574 = vunpack.c.h.b16 %v1201
    %v1575 = vunpack.c.l.b16 %v1202
    %v1576 = vunpack.c.h.b16 %v1202
    %v1577 = vunpack.c.l.b16 %v1203
    %v1578 = vunpack.c.h.b16 %v1203
    %v1579 = vunpack.c.l.b16 %v1204
    %v1580 = vunpack.c.h.b16 %v1204
    %v1581 = vunpack.c.l.b16 %v1205
    %v1582 = vunpack.c.h.b16 %v1205
    %v1583 = vunpack.c.l.b16 %v1206
    %v1584 = vunpack.c.h.b16 %v1206
    %v1585 = vunpack.c.l.b16 %v1207
    %v1586 = vunpack.c.h.b16 %v1207
    %v1587 = vunpack.c.l.b16 %v1208
    %v1588 = vunpack.c.h.b16 %v1208
    %v1589 = vunpack.c.l.b16 %v1209
    %v1590 = vunpack.c.h.b16 %v1209
    %v1591 = vunpack.c.l.b16 %v1210
    %v1592 = vunpack.c.h.b16 %v1210
    %v1593 = vunpack.c.l.b16 %v1211
    %v1594 = vunpack.c.h.b16 %v1211
    %v1595 = vunpack.c.l.b16 %v1212
    %v1596 = vunpack.c.h.b16 %v1212
    %v1597 = vunpack.c.l.b16 %v1213
    %v1598 = vunpack.c.h.b16 %v1213
    %v1599 = vunpack.c.l.b16 %v1214
    %v1600 = vunpack.c.h.b16 %v1214
    %v1601 = vunpack.c.l.b16 %v1215
    %v1602 = vunpack.c.h.b16 %v1215
    %v1603 = vunpack.c.l.b16 %v1216
    %v1604 = vunpack.c.h.b16 %v1216
    %v1605 = vunpack.c.l.b16 %v1217
    %v1606 = vunpack.c.h.b16 %v1217
    %v1607 = vunpack.c.l.b16 %v1218
    %v1608 = vunpack.c.h.b16 %v1218
    %v1609 = vunpack.c.l.b16 %v1219
    %v1610 = vunpack.c.h.b16 %v1219
    %v1611 = vunpack.c.l.b16 %v1220
    %v1612 = vunpack.c.h.b16 %v1220
    %v1613 = vunpack.c.l.b16 %v1221
    %v1614 = vunpack.c.h.b16 %v1221
    %v1615 = vunpack.c.l.b16 %v1222
    %v1616 = vunpack.c.h.b16 %v1222
    %v1617 = vunpack.c.l.b16 %v1223
    %v1618 = vunpack.c.h.b16 %v1223
    %v1619 = vunpack.c.l.b16 %v1224
    %v1620 = vunpack.c.h.b16 %v1224
    %v1621 = vunpack.c.l.b16 %v1225
    %v1622 = vunpack.c.h.b16 %v1225
    %v1623 = vunpack.c.l.b16 %v1226
    %v1624 = vunpack.c.h.b16 %v1226
    %v1625 = vunpack.c.l.b16 %v1227
    %v1626 = vunpack.c.h.b16 %v1227
    %v1627 = vpack.c.b16 %v1375, %v1371
    %v1628 = vpack.c.b16 %v1376, %v1372
    %v1629 = vpack.c.b16 %v1377, %v1373
    %v1630 = vpack.c.b16 %v1378, %v1374
    %v1631 = vpack.c.b16 %v1383, %v1379
    %v1632 = vpack.c.b16 %v1384, %v1380
    %v1633 = vpack.c.b16 %v1385, %v1381
    %v1634 = vpack.c.b16 %v1386, %v1382
    %v1635 = vpack.c.b16 %v1391, %v1387
    %v1636 = vpack.c.b16 %v1392, %v1388
    %v1637 = vpack.c.b16 %v1393, %v1389
    %v1638 = vpack.c.b16 %v1394, %v1390
    %v1639 = vpack.c.b16 %v1399, %v1395
    %v1640 = vpack.c.b16 %v1400, %v1396
    %v1641 = vpack.c.b16 %v1401, %v1397
    %v1642 = vpack.c.b16 %v1402, %v1398
    %v1643 = vpack.c.b16 %v1407, %v1403
    %v1644 = vpack.c.b16 %v1408, %v1404
    %v1645 = vpack.c.b16 %v1409, %v1405
    %v1646 = vpack.c.b16 %v1410, %v1406
    %v1647 = vpack.c.b16 %v1415, %v1411
    %v1648 = vpack.c.b16 %v1416, %v1412
    %v1649 = vpack.c.b16 %v1417, %v1413
    %v1650 = vpack.c.b16 %v1418, %v1414
    %v1651 = vpack.c.b16 %v1423, %v1419
    %v1652 = vpack.c.b16 %v1424, %v1420
    %v1653 = vpack.c.b16 %v1425, %v1421
    %v1654 = vpack.c.b16 %v1426, %v1422
    %v1655 = vpack.c.b16 %v1431, %v1427
    %v1656 = vpack.c.b16 %v1432, %v1428
    %v1657 = vpack.c.b16 %v1433, %v1429
    %v1658 = vpack.c.b16 %v1434, %v1430
    %v1659 = vpack.c.b16 %v1439, %v1435
    %v1660 = vpack.c.b16 %v1440, %v1436
    %v1661 = vpack.c.b16 %v1441, %v1437
    %v1662 = vpack.c.b16 %v1442, %v1438
    %v1663 = vpack.c.b16 %v1447, %v1443
    %v1664 = vpack.c.b16 %v1448, %v1444
    %v1665 = vpack.c.b16 %v1449, %v1445
    %v1666 = vpack.c.b16 %v1450, %v1446
    %v1667 = vpack.c.b16 %v1455, %v1451
    %v1668 = vpack.c.b16 %v1456, %v1452
    %v1669 = vpack.c.b16 %v1457, %v1453
    %v1670 = vpack.c.b16 %v1458, %v1454
    %v1671 = vpack.c.b16 %v1463, %v1459
    %v1672 = vpack.c.b16 %v1464, %v1460
    %v1673 = vpack.c.b16 %v1465, %v1461
    %v1674 = vpack.c.b16 %v1466, %v1462
    %v1675 = vpack.c.b16 %v1471, %v1467
    %v1676 = vpack.c.b16 %v1472, %v1468
    %v1677 = vpack.c.b16 %v1473, %v1469
    %v1678 = vpack.c.b16 %v1474, %v1470
    %v1679 = vpack.c.b16 %v1479, %v1475
    %v1680 = vpack.c.b16 %v1480, %v1476
    %v1681 = vpack.c.b16 %v1481, %v1477
    %v1682 = vpack.c.b16 %v1482, %v1478
    %v1683 = vpack.c.b16 %v1487, %v1483
    %v1684 = vpack.c.b16 %v1488, %v1484
    %v1685 = vpack.c.b16 %v1489, %v1485
    %v1686 = vpack.c.b16 %v1490, %v1486
    %v1687 = vpack.c.b16 %v1495, %v1491
    %v1688 = vpack.c.b16 %v1496, %v1492
    %v1689 = vpack.c.b16 %v1497, %v1493
    %v1690 = vpack.c.b16 %v1498, %v1494
    %v1691 = vpack.c.b16 %v1503, %v1499
    %v1692 = vpack.c.b16 %v1504, %v1500
    %v1693 = vpack.c.b16 %v1505, %v1501
    %v1694 = vpack.c.b16 %v1506, %v1502
    %v1695 = vpack.c.b16 %v1511, %v1507
    %v1696 = vpack.c.b16 %v1512, %v1508
    %v1697 = vpack.c.b16 %v1513, %v1509
    %v1698 = vpack.c.b16 %v1514, %v1510
    %v1699 = vpack.c.b16 %v1519, %v1515
    %v1700 = vpack.c.b16 %v1520, %v1516
    %v1701 = vpack.c.b16 %v1521, %v1517
    %v1702 = vpack.c.b16 %v1522, %v1518
    %v1703 = vpack.c.b16 %v1527, %v1523
    %v1704 = vpack.c.b16 %v1528, %v1524
    %v1705 = vpack.c.b16 %v1529, %v1525
    %v1706 = vpack.c.b16 %v1530, %v1526
    %v1707 = vpack.c.b16 %v1535, %v1531
    %v1708 = vpack.c.b16 %v1536, %v1532
    %v1709 = vpack.c.b16 %v1537, %v1533
    %v1710 = vpack.c.b16 %v1538, %v1534
    %v1711 = vpack.c.b16 %v1543, %v1539
    %v1712 = vpack.c.b16 %v1544, %v1540
    %v1713 = vpack.c.b16 %v1545, %v1541
    %v1714 = vpack.c.b16 %v1546, %v1542
    %v1715 = vpack.c.b16 %v1551, %v1547
    %v1716 = vpack.c.b16 %v1552, %v1548
    %v1717 = vpack.c.b16 %v1553, %v1549
    %v1718 = vpack.c.b16 %v1554, %v1550
    %v1719 = vpack.c.b16 %v1559, %v1555
    %v1720 = vpack.c.b16 %v1560, %v1556
    %v1721 = vpack.c.b16 %v1561, %v1557
    %v1722 = vpack.c.b16 %v1562, %v1558
    %v1723 = vpack.c.b16 %v1567, %v1563
    %v1724 = vpack.c.b16 %v1568, %v1564
    %v1725 = vpack.c.b16 %v1569, %v1565
    %v1726 = vpack.c.b16 %v1570, %v1566
    %v1727 = vpack.c.b16 %v1575, %v1571
    %v1728 = vpack.c.b16 %v1576, %v1572
    %v1729 = vpack.c.b16 %v1577, %v1573
    %v1730 = vpack.c.b16 %v1578, %v1574
    %v1731 = vpack.c.b16 %v1583, %v1579
    %v1732 = vpack.c.b16 %v1584, %v1580
    %v1733 = vpack.c.b16 %v1585, %v1581
    %v1734 = vpack.c.b16 %v1586, %v1582
    %v1735 = vpack.c.b16 %v1591, %v1587
    %v1736 = vpack.c.b16 %v1592, %v1588
    %v1737 = vpack.c.b16 %v1593, %v1589
    %v1738 = vpack.c.b16 %v1594, %v1590
    %v1739 = vpack.c.b16 %v1599, %v1595
    %v1740 = vpack.c.b16 %v1600, %v1596
    %v1741 = vpack.c.b16 %v1601, %v1597
    %v1742 = vpack.c.b16 %v1602, %v1598
    %v1743 = vpack.c.b16 %v1607, %v1603
    %v1744 = vpack.c.b16 %v1608, %v1604
    %v1745 = vpack.c.b16 %v1609, %v1605
    %v1746 = vpack.c.b16 %v1610, %v1606
    %v1747 = vpack.c.b16 %v1615, %v1611
    %v1748 = vpack.c.b16 %v1616, %v1612
    %v1749 = vpack.c.b16 %v1617, %v1613
    %v1750 = vpack.c.b16 %v1618, %v1614
    %v1751 = vpack.c.b16 %v1623, %v1619
    %v1752 = vpack.c.b16 %v1624, %v1620
    %v1753 = vpack.c.b16 %v1625, %v1621
    %v1754 = vpack.c.b16 %v1626, %v1622
    %v1884 = vperm.slane %v1228, 0
    %v1885 = vperm.slane %v1228, 1
    %v1886 = vperm.slane %v1228, 2
    %v1887 = vperm.slane %v1228, 3
    %1892 = vmatpush.bf16.msra.mxu0 %v1655
    %1893 = vmatpush.bf16.msra.mxu0 %v1651
    %1894 = vmatpush.bf16.msra.mxu0 %v1647
    %1895 = vmatpush.bf16.msra.mxu0 %v1643
    %1896 = vmatpush.bf16.msra.mxu0 %v1639
    %1897 = vmatpush.bf16.msra.mxu0 %v1635
    %1898 = vmatpush.bf16.msra.mxu0 %v1631
    %1899 = vmatpush.bf16.msra.mxu0 %v1627
    %1900 = vmatmul.bf16.gmra.mxu0 %v1239
    %v1901 = vpop.f32.mrf.mxu0
    %v1902 = vadd.f32 %v1884, %v1901
    %v1903 = vpop.f32.mrf.mxu0
    %1904 = vdwg.mxu0
    %1905 = vmatpush.bf16.msra.mxu0 %v1687
    %1906 = vmatpush.bf16.msra.mxu0 %v1683
    %1907 = vmatpush.bf16.msra.mxu0 %v1679
    %1908 = vmatpush.bf16.msra.mxu0 %v1675
    %1909 = vmatpush.bf16.msra.mxu0 %v1671
    %1910 = vmatpush.bf16.msra.mxu0 %v1667
    %1911 = vmatpush.bf16.msra.mxu0 %v1663
    %1912 = vmatpush.bf16.msra.mxu0 %v1659
    %1913 = vmatmul.bf16.gmra.mxu0 %v1240
    %v1914 = vpop.f32.mrf.mxu0
    %v1915 = vadd.f32 %v1902, %v1914
    %v1916 = vpop.f32.mrf.mxu0
    %1917 = vdwg.mxu0
    %1918 = vmatpush.bf16.msra.mxu0 %v1719
    %1919 = vmatpush.bf16.msra.mxu0 %v1715
    %1920 = vmatpush.bf16.msra.mxu0 %v1711
    %1921 = vmatpush.bf16.msra.mxu0 %v1707
    %1922 = vmatpush.bf16.msra.mxu0 %v1703
    %1923 = vmatpush.bf16.msra.mxu0 %v1699
    %1924 = vmatpush.bf16.msra.mxu0 %v1695
    %1925 = vmatpush.bf16.msra.mxu0 %v1691
    %1926 = vmatmul.bf16.gmra.mxu0 %v1241
    %v1927 = vpop.f32.mrf.mxu0
    %v1928 = vadd.f32 %v1915, %v1927
    %v1929 = vpop.f32.mrf.mxu0
    %1930 = vdwg.mxu0
    %1931 = vmatpush.bf16.msra.mxu0 %v1751
    %1932 = vmatpush.bf16.msra.mxu0 %v1747
    %1933 = vmatpush.bf16.msra.mxu0 %v1743
    %1934 = vmatpush.bf16.msra.mxu0 %v1739
    %1935 = vmatpush.bf16.msra.mxu0 %v1735
    %1936 = vmatpush.bf16.msra.mxu0 %v1731
    %1937 = vmatpush.bf16.msra.mxu0 %v1727
    %1938 = vmatpush.bf16.msra.mxu0 %v1723
    %1939 = vmatmul.bf16.gmra.mxu0 %v1242
    %v1940 = vpop.f32.mrf.mxu0
    %v1941 = vadd.f32 %v1928, %v1940
    %v1942 = vpop.f32.mrf.mxu0
    %1943 = vdwg.mxu0
    %1944 = vmatpush.bf16.msra.mxu0 %v1656
    %1945 = vmatpush.bf16.msra.mxu0 %v1652
    %1946 = vmatpush.bf16.msra.mxu0 %v1648
    %1947 = vmatpush.bf16.msra.mxu0 %v1644
    %1948 = vmatpush.bf16.msra.mxu0 %v1640
    %1949 = vmatpush.bf16.msra.mxu0 %v1636
    %1950 = vmatpush.bf16.msra.mxu0 %v1632
    %1951 = vmatpush.bf16.msra.mxu0 %v1628
    %1952 = vmatmul.bf16.gmra.mxu0 %v1239
    %v1953 = vpop.f32.mrf.mxu0
    %v1954 = vadd.f32 %v1885, %v1953
    %v1955 = vpop.f32.mrf.mxu0
    %1956 = vdwg.mxu0
    %1957 = vmatpush.bf16.msra.mxu0 %v1688
    %1958 = vmatpush.bf16.msra.mxu0 %v1684
    %1959 = vmatpush.bf16.msra.mxu0 %v1680
    %1960 = vmatpush.bf16.msra.mxu0 %v1676
    %1961 = vmatpush.bf16.msra.mxu0 %v1672
    %1962 = vmatpush.bf16.msra.mxu0 %v1668
    %1963 = vmatpush.bf16.msra.mxu0 %v1664
    %1964 = vmatpush.bf16.msra.mxu0 %v1660
    %1965 = vmatmul.bf16.gmra.mxu0 %v1240
    %v1966 = vpop.f32.mrf.mxu0
    %v1967 = vadd.f32 %v1954, %v1966
    %v1968 = vpop.f32.mrf.mxu0
    %1969 = vdwg.mxu0
    %1970 = vmatpush.bf16.msra.mxu0 %v1720
    %1971 = vmatpush.bf16.msra.mxu0 %v1716
    %1972 = vmatpush.bf16.msra.mxu0 %v1712
    %1973 = vmatpush.bf16.msra.mxu0 %v1708
    %1974 = vmatpush.bf16.msra.mxu0 %v1704
    %1975 = vmatpush.bf16.msra.mxu0 %v1700
    %1976 = vmatpush.bf16.msra.mxu0 %v1696
    %1977 = vmatpush.bf16.msra.mxu0 %v1692
    %1978 = vmatmul.bf16.gmra.mxu0 %v1241
    %v1979 = vpop.f32.mrf.mxu0
    %v1980 = vadd.f32 %v1967, %v1979
    %v1981 = vpop.f32.mrf.mxu0
    %1982 = vdwg.mxu0
    %1983 = vmatpush.bf16.msra.mxu0 %v1752
    %1984 = vmatpush.bf16.msra.mxu0 %v1748
    %1985 = vmatpush.bf16.msra.mxu0 %v1744
    %1986 = vmatpush.bf16.msra.mxu0 %v1740
    %1987 = vmatpush.bf16.msra.mxu0 %v1736
    %1988 = vmatpush.bf16.msra.mxu0 %v1732
    %1989 = vmatpush.bf16.msra.mxu0 %v1728
    %1990 = vmatpush.bf16.msra.mxu0 %v1724
    %1991 = vmatmul.bf16.gmra.mxu0 %v1242
    %v1992 = vpop.f32.mrf.mxu0
    %v1993 = vadd.f32 %v1980, %v1992
    %v1994 = vpop.f32.mrf.mxu0
    %1995 = vdwg.mxu0
    %1996 = vmatpush.bf16.msra.mxu0 %v1657
    %1997 = vmatpush.bf16.msra.mxu0 %v1653
    %1998 = vmatpush.bf16.msra.mxu0 %v1649
    %1999 = vmatpush.bf16.msra.mxu0 %v1645
    %2000 = vmatpush.bf16.msra.mxu0 %v1641
    %2001 = vmatpush.bf16.msra.mxu0 %v1637
    %2002 = vmatpush.bf16.msra.mxu0 %v1633
    %2003 = vmatpush.bf16.msra.mxu0 %v1629
    %2004 = vmatmul.bf16.gmra.mxu0 %v1239
    %v2005 = vpop.f32.mrf.mxu0
    %v2006 = vadd.f32 %v1886, %v2005
    %v2007 = vpop.f32.mrf.mxu0
    %2008 = vdwg.mxu0
    %2009 = vmatpush.bf16.msra.mxu0 %v1689
    %2010 = vmatpush.bf16.msra.mxu0 %v1685
    %2011 = vmatpush.bf16.msra.mxu0 %v1681
    %2012 = vmatpush.bf16.msra.mxu0 %v1677
    %2013 = vmatpush.bf16.msra.mxu0 %v1673
    %2014 = vmatpush.bf16.msra.mxu0 %v1669
    %2015 = vmatpush.bf16.msra.mxu0 %v1665
    %2016 = vmatpush.bf16.msra.mxu0 %v1661
    %2017 = vmatmul.bf16.gmra.mxu0 %v1240
    %v2018 = vpop.f32.mrf.mxu0
    %v2019 = vadd.f32 %v2006, %v2018
    %v2020 = vpop.f32.mrf.mxu0
    %2021 = vdwg.mxu0
    %2022 = vmatpush.bf16.msra.mxu0 %v1721
    %2023 = vmatpush.bf16.msra.mxu0 %v1717
    %2024 = vmatpush.bf16.msra.mxu0 %v1713
    %2025 = vmatpush.bf16.msra.mxu0 %v1709
    %2026 = vmatpush.bf16.msra.mxu0 %v1705
    %2027 = vmatpush.bf16.msra.mxu0 %v1701
    %2028 = vmatpush.bf16.msra.mxu0 %v1697
    %2029 = vmatpush.bf16.msra.mxu0 %v1693
    %2030 = vmatmul.bf16.gmra.mxu0 %v1241
    %v2031 = vpop.f32.mrf.mxu0
    %v2032 = vadd.f32 %v2019, %v2031
    %v2033 = vpop.f32.mrf.mxu0
    %2034 = vdwg.mxu0
    %2035 = vmatpush.bf16.msra.mxu0 %v1753
    %2036 = vmatpush.bf16.msra.mxu0 %v1749
    %2037 = vmatpush.bf16.msra.mxu0 %v1745
    %2038 = vmatpush.bf16.msra.mxu0 %v1741
    %2039 = vmatpush.bf16.msra.mxu0 %v1737
    %2040 = vmatpush.bf16.msra.mxu0 %v1733
    %2041 = vmatpush.bf16.msra.mxu0 %v1729
    %2042 = vmatpush.bf16.msra.mxu0 %v1725
    %2043 = vmatmul.bf16.gmra.mxu0 %v1242
    %v2044 = vpop.f32.mrf.mxu0
    %v2045 = vadd.f32 %v2032, %v2044
    %v2046 = vpop.f32.mrf.mxu0
    %2047 = vdwg.mxu0
    %2048 = vmatpush.bf16.msra.mxu0 %v1658
    %2049 = vmatpush.bf16.msra.mxu0 %v1654
    %2050 = vmatpush.bf16.msra.mxu0 %v1650
    %2051 = vmatpush.bf16.msra.mxu0 %v1646
    %2052 = vmatpush.bf16.msra.mxu0 %v1642
    %2053 = vmatpush.bf16.msra.mxu0 %v1638
    %2054 = vmatpush.bf16.msra.mxu0 %v1634
    %2055 = vmatpush.bf16.msra.mxu0 %v1630
    %2056 = vmatmul.bf16.gmra.mxu0 %v1239
    %v2057 = vpop.f32.mrf.mxu0
    %v2058 = vadd.f32 %v1887, %v2057
    %v2059 = vpop.f32.mrf.mxu0
    %2060 = vdwg.mxu0
    %2061 = vmatpush.bf16.msra.mxu0 %v1690
    %2062 = vmatpush.bf16.msra.mxu0 %v1686
    %2063 = vmatpush.bf16.msra.mxu0 %v1682
    %2064 = vmatpush.bf16.msra.mxu0 %v1678
    %2065 = vmatpush.bf16.msra.mxu0 %v1674
    %2066 = vmatpush.bf16.msra.mxu0 %v1670
    %2067 = vmatpush.bf16.msra.mxu0 %v1666
    %2068 = vmatpush.bf16.msra.mxu0 %v1662
    %2069 = vmatmul.bf16.gmra.mxu0 %v1240
    %v2070 = vpop.f32.mrf.mxu0
    %v2071 = vadd.f32 %v2058, %v2070
    %v2072 = vpop.f32.mrf.mxu0
    %2073 = vdwg.mxu0
    %2074 = vmatpush.bf16.msra.mxu0 %v1722
    %2075 = vmatpush.bf16.msra.mxu0 %v1718
    %2076 = vmatpush.bf16.msra.mxu0 %v1714
    %2077 = vmatpush.bf16.msra.mxu0 %v1710
    %2078 = vmatpush.bf16.msra.mxu0 %v1706
    %2079 = vmatpush.bf16.msra.mxu0 %v1702
    %2080 = vmatpush.bf16.msra.mxu0 %v1698
    %2081 = vmatpush.bf16.msra.mxu0 %v1694
    %2082 = vmatmul.bf16.gmra.mxu0 %v1241
    %v2083 = vpop.f32.mrf.mxu0
    %v2084 = vadd.f32 %v2071, %v2083
    %v2085 = vpop.f32.mrf.mxu0
    %2086 = vdwg.mxu0
    %2087 = vmatpush.bf16.msra.mxu0 %v1754
    %2088 = vmatpush.bf16.msra.mxu0 %v1750
    %2089 = vmatpush.bf16.msra.mxu0 %v1746
    %2090 = vmatpush.bf16.msra.mxu0 %v1742
    %2091 = vmatpush.bf16.msra.mxu0 %v1738
    %2092 = vmatpush.bf16.msra.mxu0 %v1734
    %2093 = vmatpush.bf16.msra.mxu0 %v1730
    %2094 = vmatpush.bf16.msra.mxu0 %v1726
    %2095 = vmatmul.bf16.gmra.mxu0 %v1242
    %v2096 = vpop.f32.mrf.mxu0
    %v2097 = vadd.f32 %v2084, %v2096
    %v2098 = vpop.f32.mrf.mxu0
    %2099 = vdwg.mxu0
    %v2100 = vld [vmem:[#allocation9 + $0x20] sm:$0xff]
    %v2101 = vld [vmem:[#allocation9 + $0x28] sm:$0xff]
    %v2102 = vld [vmem:[#allocation9 + $0x50] sm:$0xff]
    %v2103 = vld [vmem:[#allocation9 + $0x58] sm:$0xff]
    %v2104 = vld [vmem:[#allocation9 + $0x80] sm:$0xff]
    %v2105 = vld [vmem:[#allocation9 + $0x88] sm:$0xff]
    %v2106 = vld [vmem:[#allocation9 + $0xb0] sm:$0xff]
    %v2107 = vld [vmem:[#allocation9 + $0xb8] sm:$0xff]
    %v2108 = vld [vmem:[#allocation9 + $0xe0] sm:$0xff]
    %v2109 = vld [vmem:[#allocation9 + $0xe8] sm:$0xff]
    %v2110 = vld [vmem:[#allocation9 + $0x110] sm:$0xff]
    %v2111 = vld [vmem:[#allocation9 + $0x118] sm:$0xff]
    %v2112 = vld [vmem:[#allocation9 + $0x140] sm:$0xff]
    %v2113 = vld [vmem:[#allocation9 + $0x148] sm:$0xff]
    %v2114 = vld [vmem:[#allocation9 + $0x170] sm:$0xff]
    %v2115 = vld [vmem:[#allocation9 + $0x178] sm:$0xff]
    %v2116 = vld [vmem:[#allocation9 + $0x1a0] sm:$0xff]
    %v2117 = vld [vmem:[#allocation9 + $0x1a8] sm:$0xff]
    %v2118 = vld [vmem:[#allocation9 + $0x1d0] sm:$0xff]
    %v2119 = vld [vmem:[#allocation9 + $0x1d8] sm:$0xff]
    %v2120 = vld [vmem:[#allocation9 + $0x200] sm:$0xff]
    %v2121 = vld [vmem:[#allocation9 + $0x208] sm:$0xff]
    %v2122 = vld [vmem:[#allocation9 + $0x230] sm:$0xff]
    %v2123 = vld [vmem:[#allocation9 + $0x238] sm:$0xff]
    %v2124 = vld [vmem:[#allocation9 + $0x260] sm:$0xff]
    %v2125 = vld [vmem:[#allocation9 + $0x268] sm:$0xff]
    %v2126 = vld [vmem:[#allocation9 + $0x290] sm:$0xff]
    %v2127 = vld [vmem:[#allocation9 + $0x298] sm:$0xff]
    %v2128 = vld [vmem:[#allocation9 + $0x2c0] sm:$0xff]
    %v2129 = vld [vmem:[#allocation9 + $0x2c8] sm:$0xff]
    %v2130 = vld [vmem:[#allocation9 + $0x2f0] sm:$0xff]
    %v2131 = vld [vmem:[#allocation9 + $0x2f8] sm:$0xff]
    %v2132 = vld [vmem:[#allocation9 + $0x320] sm:$0xff]
    %v2133 = vld [vmem:[#allocation9 + $0x328] sm:$0xff]
    %v2134 = vld [vmem:[#allocation9 + $0x350] sm:$0xff]
    %v2135 = vld [vmem:[#allocation9 + $0x358] sm:$0xff]
    %v2136 = vld [vmem:[#allocation9 + $0x380] sm:$0xff]
    %v2137 = vld [vmem:[#allocation9 + $0x388] sm:$0xff]
    %v2138 = vld [vmem:[#allocation9 + $0x3b0] sm:$0xff]
    %v2139 = vld [vmem:[#allocation9 + $0x3b8] sm:$0xff]
    %v2140 = vld [vmem:[#allocation9 + $0x3e0] sm:$0xff]
    %v2141 = vld [vmem:[#allocation9 + $0x3e8] sm:$0xff]
    %v2142 = vld [vmem:[#allocation9 + $0x410] sm:$0xff]
    %v2143 = vld [vmem:[#allocation9 + $0x418] sm:$0xff]
    %v2144 = vld [vmem:[#allocation9 + $0x440] sm:$0xff]
    %v2145 = vld [vmem:[#allocation9 + $0x448] sm:$0xff]
    %v2146 = vld [vmem:[#allocation9 + $0x470] sm:$0xff]
    %v2147 = vld [vmem:[#allocation9 + $0x478] sm:$0xff]
    %v2148 = vld [vmem:[#allocation9 + $0x4a0] sm:$0xff]
    %v2149 = vld [vmem:[#allocation9 + $0x4a8] sm:$0xff]
    %v2150 = vld [vmem:[#allocation9 + $0x4d0] sm:$0xff]
    %v2151 = vld [vmem:[#allocation9 + $0x4d8] sm:$0xff]
    %v2152 = vld [vmem:[#allocation9 + $0x500] sm:$0xff]
    %v2153 = vld [vmem:[#allocation9 + $0x508] sm:$0xff]
    %v2154 = vld [vmem:[#allocation9 + $0x530] sm:$0xff]
    %v2155 = vld [vmem:[#allocation9 + $0x538] sm:$0xff]
    %v2156 = vld [vmem:[#allocation9 + $0x560] sm:$0xff]
    %v2157 = vld [vmem:[#allocation9 + $0x568] sm:$0xff]
    %v2158 = vld [vmem:[#allocation9 + $0x590] sm:$0xff]
    %v2159 = vld [vmem:[#allocation9 + $0x598] sm:$0xff]
    %v2160 = vld [vmem:[#allocation9 + $0x5c0] sm:$0xff]
    %v2161 = vld [vmem:[#allocation9 + $0x5c8] sm:$0xff]
    %v2162 = vld [vmem:[#allocation9 + $0x5f0] sm:$0xff]
    %v2163 = vld [vmem:[#allocation9 + $0x5f8] sm:$0xff]
    %v2164 = vld [vmem:[#allocation9 + $0x620] sm:$0xff]
    %v2165 = vld [vmem:[#allocation9 + $0x628] sm:$0xff]
    %v2166 = vld [vmem:[#allocation9 + $0x650] sm:$0xff]
    %v2167 = vld [vmem:[#allocation9 + $0x658] sm:$0xff]
    %v2168 = vld [vmem:[#allocation9 + $0x680] sm:$0xff]
    %v2169 = vld [vmem:[#allocation9 + $0x688] sm:$0xff]
    %v2170 = vld [vmem:[#allocation9 + $0x6b0] sm:$0xff]
    %v2171 = vld [vmem:[#allocation9 + $0x6b8] sm:$0xff]
    %v2172 = vld [vmem:[#allocation9 + $0x6e0] sm:$0xff]
    %v2173 = vld [vmem:[#allocation9 + $0x6e8] sm:$0xff]
    %v2174 = vld [vmem:[#allocation9 + $0x710] sm:$0xff]
    %v2175 = vld [vmem:[#allocation9 + $0x718] sm:$0xff]
    %v2176 = vld [vmem:[#allocation9 + $0x740] sm:$0xff]
    %v2177 = vld [vmem:[#allocation9 + $0x748] sm:$0xff]
    %v2178 = vld [vmem:[#allocation9 + $0x770] sm:$0xff]
    %v2179 = vld [vmem:[#allocation9 + $0x778] sm:$0xff]
    %v2180 = vld [vmem:[#allocation9 + $0x7a0] sm:$0xff]
    %v2181 = vld [vmem:[#allocation9 + $0x7a8] sm:$0xff]
    %v2182 = vld [vmem:[#allocation9 + $0x7d0] sm:$0xff]
    %v2183 = vld [vmem:[#allocation9 + $0x7d8] sm:$0xff]
    %v2184 = vld [vmem:[#allocation9 + $0x800] sm:$0xff]
    %v2185 = vld [vmem:[#allocation9 + $0x808] sm:$0xff]
    %v2186 = vld [vmem:[#allocation9 + $0x830] sm:$0xff]
    %v2187 = vld [vmem:[#allocation9 + $0x838] sm:$0xff]
    %v2188 = vld [vmem:[#allocation9 + $0x860] sm:$0xff]
    %v2189 = vld [vmem:[#allocation9 + $0x868] sm:$0xff]
    %v2190 = vld [vmem:[#allocation9 + $0x890] sm:$0xff]
    %v2191 = vld [vmem:[#allocation9 + $0x898] sm:$0xff]
    %v2192 = vld [vmem:[#allocation9 + $0x8c0] sm:$0xff]
    %v2193 = vld [vmem:[#allocation9 + $0x8c8] sm:$0xff]
    %v2194 = vld [vmem:[#allocation9 + $0x8f0] sm:$0xff]
    %v2195 = vld [vmem:[#allocation9 + $0x8f8] sm:$0xff]
    %v2196 = vld [vmem:[#allocation9 + $0x920] sm:$0xff]
    %v2197 = vld [vmem:[#allocation9 + $0x928] sm:$0xff]
    %v2198 = vld [vmem:[#allocation9 + $0x950] sm:$0xff]
    %v2199 = vld [vmem:[#allocation9 + $0x958] sm:$0xff]
    %v2200 = vld [vmem:[#allocation9 + $0x980] sm:$0xff]
    %v2201 = vld [vmem:[#allocation9 + $0x988] sm:$0xff]
    %v2202 = vld [vmem:[#allocation9 + $0x9b0] sm:$0xff]
    %v2203 = vld [vmem:[#allocation9 + $0x9b8] sm:$0xff]
    %v2204 = vld [vmem:[#allocation9 + $0x9e0] sm:$0xff]
    %v2205 = vld [vmem:[#allocation9 + $0x9e8] sm:$0xff]
    %v2206 = vld [vmem:[#allocation9 + $0xa10] sm:$0xff]
    %v2207 = vld [vmem:[#allocation9 + $0xa18] sm:$0xff]
    %v2208 = vld [vmem:[#allocation9 + $0xa40] sm:$0xff]
    %v2209 = vld [vmem:[#allocation9 + $0xa48] sm:$0xff]
    %v2210 = vld [vmem:[#allocation9 + $0xa70] sm:$0xff]
    %v2211 = vld [vmem:[#allocation9 + $0xa78] sm:$0xff]
    %v2212 = vld [vmem:[#allocation9 + $0xaa0] sm:$0xff]
    %v2213 = vld [vmem:[#allocation9 + $0xaa8] sm:$0xff]
    %v2214 = vld [vmem:[#allocation9 + $0xad0] sm:$0xff]
    %v2215 = vld [vmem:[#allocation9 + $0xad8] sm:$0xff]
    %v2216 = vld [vmem:[#allocation9 + $0xb00] sm:$0xff]
    %v2217 = vld [vmem:[#allocation9 + $0xb08] sm:$0xff]
    %v2218 = vld [vmem:[#allocation9 + $0xb30] sm:$0xff]
    %v2219 = vld [vmem:[#allocation9 + $0xb38] sm:$0xff]
    %v2220 = vld [vmem:[#allocation9 + $0xb60] sm:$0xff]
    %v2221 = vld [vmem:[#allocation9 + $0xb68] sm:$0xff]
    %v2222 = vld [vmem:[#allocation9 + $0xb90] sm:$0xff]
    %v2223 = vld [vmem:[#allocation9 + $0xb98] sm:$0xff]
    %v2224 = vld [vmem:[#allocation9 + $0xbc0] sm:$0xff]
    %v2225 = vld [vmem:[#allocation9 + $0xbc8] sm:$0xff]
    %v2226 = vld [vmem:[#allocation9 + $0xbf0] sm:$0xff]
    %v2227 = vld [vmem:[#allocation9 + $0xbf8] sm:$0xff]
    %v2228 = vld [vmem:[#allocation11 + $0x8] sm:$0xf]
    %v2229 = vld [vmem:[#allocation8] sm:$0xf]
    %v2231 = vperm.slane %v2229, 0
    %v2232 = vperm.slane %v2229, 1
    %v2233 = vperm.slane %v2229, 2
    %v2234 = vperm.slane %v2229, 3
    %v2239 = vpack.c.bf16 %v2231, %v2231
    %v2240 = vpack.c.bf16 %v2232, %v2232
    %v2241 = vpack.c.bf16 %v2233, %v2233
    %v2242 = vpack.c.bf16 %v2234, %v2234
    %v2371 = vunpack.c.l.b16 %v2100
    %v2372 = vunpack.c.h.b16 %v2100
    %v2373 = vunpack.c.l.b16 %v2101
    %v2374 = vunpack.c.h.b16 %v2101
    %v2375 = vunpack.c.l.b16 %v2102
    %v2376 = vunpack.c.h.b16 %v2102
    %v2377 = vunpack.c.l.b16 %v2103
    %v2378 = vunpack.c.h.b16 %v2103
    %v2379 = vunpack.c.l.b16 %v2104
    %v2380 = vunpack.c.h.b16 %v2104
    %v2381 = vunpack.c.l.b16 %v2105
    %v2382 = vunpack.c.h.b16 %v2105
    %v2383 = vunpack.c.l.b16 %v2106
    %v2384 = vunpack.c.h.b16 %v2106
    %v2385 = vunpack.c.l.b16 %v2107
    %v2386 = vunpack.c.h.b16 %v2107
    %v2387 = vunpack.c.l.b16 %v2108
    %v2388 = vunpack.c.h.b16 %v2108
    %v2389 = vunpack.c.l.b16 %v2109
    %v2390 = vunpack.c.h.b16 %v2109
    %v2391 = vunpack.c.l.b16 %v2110
    %v2392 = vunpack.c.h.b16 %v2110
    %v2393 = vunpack.c.l.b16 %v2111
    %v2394 = vunpack.c.h.b16 %v2111
    %v2395 = vunpack.c.l.b16 %v2112
    %v2396 = vunpack.c.h.b16 %v2112
    %v2397 = vunpack.c.l.b16 %v2113
    %v2398 = vunpack.c.h.b16 %v2113
    %v2399 = vunpack.c.l.b16 %v2114
    %v2400 = vunpack.c.h.b16 %v2114
    %v2401 = vunpack.c.l.b16 %v2115
    %v2402 = vunpack.c.h.b16 %v2115
    %v2403 = vunpack.c.l.b16 %v2116
    %v2404 = vunpack.c.h.b16 %v2116
    %v2405 = vunpack.c.l.b16 %v2117
    %v2406 = vunpack.c.h.b16 %v2117
    %v2407 = vunpack.c.l.b16 %v2118
    %v2408 = vunpack.c.h.b16 %v2118
    %v2409 = vunpack.c.l.b16 %v2119
    %v2410 = vunpack.c.h.b16 %v2119
    %v2411 = vunpack.c.l.b16 %v2120
    %v2412 = vunpack.c.h.b16 %v2120
    %v2413 = vunpack.c.l.b16 %v2121
    %v2414 = vunpack.c.h.b16 %v2121
    %v2415 = vunpack.c.l.b16 %v2122
    %v2416 = vunpack.c.h.b16 %v2122
    %v2417 = vunpack.c.l.b16 %v2123
    %v2418 = vunpack.c.h.b16 %v2123
    %v2419 = vunpack.c.l.b16 %v2124
    %v2420 = vunpack.c.h.b16 %v2124
    %v2421 = vunpack.c.l.b16 %v2125
    %v2422 = vunpack.c.h.b16 %v2125
    %v2423 = vunpack.c.l.b16 %v2126
    %v2424 = vunpack.c.h.b16 %v2126
    %v2425 = vunpack.c.l.b16 %v2127
    %v2426 = vunpack.c.h.b16 %v2127
    %v2427 = vunpack.c.l.b16 %v2128
    %v2428 = vunpack.c.h.b16 %v2128
    %v2429 = vunpack.c.l.b16 %v2129
    %v2430 = vunpack.c.h.b16 %v2129
    %v2431 = vunpack.c.l.b16 %v2130
    %v2432 = vunpack.c.h.b16 %v2130
    %v2433 = vunpack.c.l.b16 %v2131
    %v2434 = vunpack.c.h.b16 %v2131
    %v2435 = vunpack.c.l.b16 %v2132
    %v2436 = vunpack.c.h.b16 %v2132
    %v2437 = vunpack.c.l.b16 %v2133
    %v2438 = vunpack.c.h.b16 %v2133
    %v2439 = vunpack.c.l.b16 %v2134
    %v2440 = vunpack.c.h.b16 %v2134
    %v2441 = vunpack.c.l.b16 %v2135
    %v2442 = vunpack.c.h.b16 %v2135
    %v2443 = vunpack.c.l.b16 %v2136
    %v2444 = vunpack.c.h.b16 %v2136
    %v2445 = vunpack.c.l.b16 %v2137
    %v2446 = vunpack.c.h.b16 %v2137
    %v2447 = vunpack.c.l.b16 %v2138
    %v2448 = vunpack.c.h.b16 %v2138
    %v2449 = vunpack.c.l.b16 %v2139
    %v2450 = vunpack.c.h.b16 %v2139
    %v2451 = vunpack.c.l.b16 %v2140
    %v2452 = vunpack.c.h.b16 %v2140
    %v2453 = vunpack.c.l.b16 %v2141
    %v2454 = vunpack.c.h.b16 %v2141
    %v2455 = vunpack.c.l.b16 %v2142
    %v2456 = vunpack.c.h.b16 %v2142
    %v2457 = vunpack.c.l.b16 %v2143
    %v2458 = vunpack.c.h.b16 %v2143
    %v2459 = vunpack.c.l.b16 %v2144
    %v2460 = vunpack.c.h.b16 %v2144
    %v2461 = vunpack.c.l.b16 %v2145
    %v2462 = vunpack.c.h.b16 %v2145
    %v2463 = vunpack.c.l.b16 %v2146
    %v2464 = vunpack.c.h.b16 %v2146
    %v2465 = vunpack.c.l.b16 %v2147
    %v2466 = vunpack.c.h.b16 %v2147
    %v2467 = vunpack.c.l.b16 %v2148
    %v2468 = vunpack.c.h.b16 %v2148
    %v2469 = vunpack.c.l.b16 %v2149
    %v2470 = vunpack.c.h.b16 %v2149
    %v2471 = vunpack.c.l.b16 %v2150
    %v2472 = vunpack.c.h.b16 %v2150
    %v2473 = vunpack.c.l.b16 %v2151
    %v2474 = vunpack.c.h.b16 %v2151
    %v2475 = vunpack.c.l.b16 %v2152
    %v2476 = vunpack.c.h.b16 %v2152
    %v2477 = vunpack.c.l.b16 %v2153
    %v2478 = vunpack.c.h.b16 %v2153
    %v2479 = vunpack.c.l.b16 %v2154
    %v2480 = vunpack.c.h.b16 %v2154
    %v2481 = vunpack.c.l.b16 %v2155
    %v2482 = vunpack.c.h.b16 %v2155
    %v2483 = vunpack.c.l.b16 %v2156
    %v2484 = vunpack.c.h.b16 %v2156
    %v2485 = vunpack.c.l.b16 %v2157
    %v2486 = vunpack.c.h.b16 %v2157
    %v2487 = vunpack.c.l.b16 %v2158
    %v2488 = vunpack.c.h.b16 %v2158
    %v2489 = vunpack.c.l.b16 %v2159
    %v2490 = vunpack.c.h.b16 %v2159
    %v2491 = vunpack.c.l.b16 %v2160
    %v2492 = vunpack.c.h.b16 %v2160
    %v2493 = vunpack.c.l.b16 %v2161
    %v2494 = vunpack.c.h.b16 %v2161
    %v2495 = vunpack.c.l.b16 %v2162
    %v2496 = vunpack.c.h.b16 %v2162
    %v2497 = vunpack.c.l.b16 %v2163
    %v2498 = vunpack.c.h.b16 %v2163
    %v2499 = vunpack.c.l.b16 %v2164
    %v2500 = vunpack.c.h.b16 %v2164
    %v2501 = vunpack.c.l.b16 %v2165
    %v2502 = vunpack.c.h.b16 %v2165
    %v2503 = vunpack.c.l.b16 %v2166
    %v2504 = vunpack.c.h.b16 %v2166
    %v2505 = vunpack.c.l.b16 %v2167
    %v2506 = vunpack.c.h.b16 %v2167
    %v2507 = vunpack.c.l.b16 %v2168
    %v2508 = vunpack.c.h.b16 %v2168
    %v2509 = vunpack.c.l.b16 %v2169
    %v2510 = vunpack.c.h.b16 %v2169
    %v2511 = vunpack.c.l.b16 %v2170
    %v2512 = vunpack.c.h.b16 %v2170
    %v2513 = vunpack.c.l.b16 %v2171
    %v2514 = vunpack.c.h.b16 %v2171
    %v2515 = vunpack.c.l.b16 %v2172
    %v2516 = vunpack.c.h.b16 %v2172
    %v2517 = vunpack.c.l.b16 %v2173
    %v2518 = vunpack.c.h.b16 %v2173
    %v2519 = vunpack.c.l.b16 %v2174
    %v2520 = vunpack.c.h.b16 %v2174
    %v2521 = vunpack.c.l.b16 %v2175
    %v2522 = vunpack.c.h.b16 %v2175
    %v2523 = vunpack.c.l.b16 %v2176
    %v2524 = vunpack.c.h.b16 %v2176
    %v2525 = vunpack.c.l.b16 %v2177
    %v2526 = vunpack.c.h.b16 %v2177
    %v2527 = vunpack.c.l.b16 %v2178
    %v2528 = vunpack.c.h.b16 %v2178
    %v2529 = vunpack.c.l.b16 %v2179
    %v2530 = vunpack.c.h.b16 %v2179
    %v2531 = vunpack.c.l.b16 %v2180
    %v2532 = vunpack.c.h.b16 %v2180
    %v2533 = vunpack.c.l.b16 %v2181
    %v2534 = vunpack.c.h.b16 %v2181
    %v2535 = vunpack.c.l.b16 %v2182
    %v2536 = vunpack.c.h.b16 %v2182
    %v2537 = vunpack.c.l.b16 %v2183
    %v2538 = vunpack.c.h.b16 %v2183
    %v2539 = vunpack.c.l.b16 %v2184
    %v2540 = vunpack.c.h.b16 %v2184
    %v2541 = vunpack.c.l.b16 %v2185
    %v2542 = vunpack.c.h.b16 %v2185
    %v2543 = vunpack.c.l.b16 %v2186
    %v2544 = vunpack.c.h.b16 %v2186
    %v2545 = vunpack.c.l.b16 %v2187
    %v2546 = vunpack.c.h.b16 %v2187
    %v2547 = vunpack.c.l.b16 %v2188
    %v2548 = vunpack.c.h.b16 %v2188
    %v2549 = vunpack.c.l.b16 %v2189
    %v2550 = vunpack.c.h.b16 %v2189
    %v2551 = vunpack.c.l.b16 %v2190
    %v2552 = vunpack.c.h.b16 %v2190
    %v2553 = vunpack.c.l.b16 %v2191
    %v2554 = vunpack.c.h.b16 %v2191
    %v2555 = vunpack.c.l.b16 %v2192
    %v2556 = vunpack.c.h.b16 %v2192
    %v2557 = vunpack.c.l.b16 %v2193
    %v2558 = vunpack.c.h.b16 %v2193
    %v2559 = vunpack.c.l.b16 %v2194
    %v2560 = vunpack.c.h.b16 %v2194
    %v2561 = vunpack.c.l.b16 %v2195
    %v2562 = vunpack.c.h.b16 %v2195
    %v2563 = vunpack.c.l.b16 %v2196
    %v2564 = vunpack.c.h.b16 %v2196
    %v2565 = vunpack.c.l.b16 %v2197
    %v2566 = vunpack.c.h.b16 %v2197
    %v2567 = vunpack.c.l.b16 %v2198
    %v2568 = vunpack.c.h.b16 %v2198
    %v2569 = vunpack.c.l.b16 %v2199
    %v2570 = vunpack.c.h.b16 %v2199
    %v2571 = vunpack.c.l.b16 %v2200
    %v2572 = vunpack.c.h.b16 %v2200
    %v2573 = vunpack.c.l.b16 %v2201
    %v2574 = vunpack.c.h.b16 %v2201
    %v2575 = vunpack.c.l.b16 %v2202
    %v2576 = vunpack.c.h.b16 %v2202
    %v2577 = vunpack.c.l.b16 %v2203
    %v2578 = vunpack.c.h.b16 %v2203
    %v2579 = vunpack.c.l.b16 %v2204
    %v2580 = vunpack.c.h.b16 %v2204
    %v2581 = vunpack.c.l.b16 %v2205
    %v2582 = vunpack.c.h.b16 %v2205
    %v2583 = vunpack.c.l.b16 %v2206
    %v2584 = vunpack.c.h.b16 %v2206
    %v2585 = vunpack.c.l.b16 %v2207
    %v2586 = vunpack.c.h.b16 %v2207
    %v2587 = vunpack.c.l.b16 %v2208
    %v2588 = vunpack.c.h.b16 %v2208
    %v2589 = vunpack.c.l.b16 %v2209
    %v2590 = vunpack.c.h.b16 %v2209
    %v2591 = vunpack.c.l.b16 %v2210
    %v2592 = vunpack.c.h.b16 %v2210
    %v2593 = vunpack.c.l.b16 %v2211
    %v2594 = vunpack.c.h.b16 %v2211
    %v2595 = vunpack.c.l.b16 %v2212
    %v2596 = vunpack.c.h.b16 %v2212
    %v2597 = vunpack.c.l.b16 %v2213
    %v2598 = vunpack.c.h.b16 %v2213
    %v2599 = vunpack.c.l.b16 %v2214
    %v2600 = vunpack.c.h.b16 %v2214
    %v2601 = vunpack.c.l.b16 %v2215
    %v2602 = vunpack.c.h.b16 %v2215
    %v2603 = vunpack.c.l.b16 %v2216
    %v2604 = vunpack.c.h.b16 %v2216
    %v2605 = vunpack.c.l.b16 %v2217
    %v2606 = vunpack.c.h.b16 %v2217
    %v2607 = vunpack.c.l.b16 %v2218
    %v2608 = vunpack.c.h.b16 %v2218
    %v2609 = vunpack.c.l.b16 %v2219
    %v2610 = vunpack.c.h.b16 %v2219
    %v2611 = vunpack.c.l.b16 %v2220
    %v2612 = vunpack.c.h.b16 %v2220
    %v2613 = vunpack.c.l.b16 %v2221
    %v2614 = vunpack.c.h.b16 %v2221
    %v2615 = vunpack.c.l.b16 %v2222
    %v2616 = vunpack.c.h.b16 %v2222
    %v2617 = vunpack.c.l.b16 %v2223
    %v2618 = vunpack.c.h.b16 %v2223
    %v2619 = vunpack.c.l.b16 %v2224
    %v2620 = vunpack.c.h.b16 %v2224
    %v2621 = vunpack.c.l.b16 %v2225
    %v2622 = vunpack.c.h.b16 %v2225
    %v2623 = vunpack.c.l.b16 %v2226
    %v2624 = vunpack.c.h.b16 %v2226
    %v2625 = vunpack.c.l.b16 %v2227
    %v2626 = vunpack.c.h.b16 %v2227
    %v2627 = vpack.c.b16 %v2375, %v2371
    %v2628 = vpack.c.b16 %v2376, %v2372
    %v2629 = vpack.c.b16 %v2377, %v2373
    %v2630 = vpack.c.b16 %v2378, %v2374
    %v2631 = vpack.c.b16 %v2383, %v2379
    %v2632 = vpack.c.b16 %v2384, %v2380
    %v2633 = vpack.c.b16 %v2385, %v2381
    %v2634 = vpack.c.b16 %v2386, %v2382
    %v2635 = vpack.c.b16 %v2391, %v2387
    %v2636 = vpack.c.b16 %v2392, %v2388
    %v2637 = vpack.c.b16 %v2393, %v2389
    %v2638 = vpack.c.b16 %v2394, %v2390
    %v2639 = vpack.c.b16 %v2399, %v2395
    %v2640 = vpack.c.b16 %v2400, %v2396
    %v2641 = vpack.c.b16 %v2401, %v2397
    %v2642 = vpack.c.b16 %v2402, %v2398
    %v2643 = vpack.c.b16 %v2407, %v2403
    %v2644 = vpack.c.b16 %v2408, %v2404
    %v2645 = vpack.c.b16 %v2409, %v2405
    %v2646 = vpack.c.b16 %v2410, %v2406
    %v2647 = vpack.c.b16 %v2415, %v2411
    %v2648 = vpack.c.b16 %v2416, %v2412
    %v2649 = vpack.c.b16 %v2417, %v2413
    %v2650 = vpack.c.b16 %v2418, %v2414
    %v2651 = vpack.c.b16 %v2423, %v2419
    %v2652 = vpack.c.b16 %v2424, %v2420
    %v2653 = vpack.c.b16 %v2425, %v2421
    %v2654 = vpack.c.b16 %v2426, %v2422
    %v2655 = vpack.c.b16 %v2431, %v2427
    %v2656 = vpack.c.b16 %v2432, %v2428
    %v2657 = vpack.c.b16 %v2433, %v2429
    %v2658 = vpack.c.b16 %v2434, %v2430
    %v2659 = vpack.c.b16 %v2439, %v2435
    %v2660 = vpack.c.b16 %v2440, %v2436
    %v2661 = vpack.c.b16 %v2441, %v2437
    %v2662 = vpack.c.b16 %v2442, %v2438
    %v2663 = vpack.c.b16 %v2447, %v2443
    %v2664 = vpack.c.b16 %v2448, %v2444
    %v2665 = vpack.c.b16 %v2449, %v2445
    %v2666 = vpack.c.b16 %v2450, %v2446
    %v2667 = vpack.c.b16 %v2455, %v2451
    %v2668 = vpack.c.b16 %v2456, %v2452
    %v2669 = vpack.c.b16 %v2457, %v2453
    %v2670 = vpack.c.b16 %v2458, %v2454
    %v2671 = vpack.c.b16 %v2463, %v2459
    %v2672 = vpack.c.b16 %v2464, %v2460
    %v2673 = vpack.c.b16 %v2465, %v2461
    %v2674 = vpack.c.b16 %v2466, %v2462
    %v2675 = vpack.c.b16 %v2471, %v2467
    %v2676 = vpack.c.b16 %v2472, %v2468
    %v2677 = vpack.c.b16 %v2473, %v2469
    %v2678 = vpack.c.b16 %v2474, %v2470
    %v2679 = vpack.c.b16 %v2479, %v2475
    %v2680 = vpack.c.b16 %v2480, %v2476
    %v2681 = vpack.c.b16 %v2481, %v2477
    %v2682 = vpack.c.b16 %v2482, %v2478
    %v2683 = vpack.c.b16 %v2487, %v2483
    %v2684 = vpack.c.b16 %v2488, %v2484
    %v2685 = vpack.c.b16 %v2489, %v2485
    %v2686 = vpack.c.b16 %v2490, %v2486
    %v2687 = vpack.c.b16 %v2495, %v2491
    %v2688 = vpack.c.b16 %v2496, %v2492
    %v2689 = vpack.c.b16 %v2497, %v2493
    %v2690 = vpack.c.b16 %v2498, %v2494
    %v2691 = vpack.c.b16 %v2503, %v2499
    %v2692 = vpack.c.b16 %v2504, %v2500
    %v2693 = vpack.c.b16 %v2505, %v2501
    %v2694 = vpack.c.b16 %v2506, %v2502
    %v2695 = vpack.c.b16 %v2511, %v2507
    %v2696 = vpack.c.b16 %v2512, %v2508
    %v2697 = vpack.c.b16 %v2513, %v2509
    %v2698 = vpack.c.b16 %v2514, %v2510
    %v2699 = vpack.c.b16 %v2519, %v2515
    %v2700 = vpack.c.b16 %v2520, %v2516
    %v2701 = vpack.c.b16 %v2521, %v2517
    %v2702 = vpack.c.b16 %v2522, %v2518
    %v2703 = vpack.c.b16 %v2527, %v2523
    %v2704 = vpack.c.b16 %v2528, %v2524
    %v2705 = vpack.c.b16 %v2529, %v2525
    %v2706 = vpack.c.b16 %v2530, %v2526
    %v2707 = vpack.c.b16 %v2535, %v2531
    %v2708 = vpack.c.b16 %v2536, %v2532
    %v2709 = vpack.c.b16 %v2537, %v2533
    %v2710 = vpack.c.b16 %v2538, %v2534
    %v2711 = vpack.c.b16 %v2543, %v2539
    %v2712 = vpack.c.b16 %v2544, %v2540
    %v2713 = vpack.c.b16 %v2545, %v2541
    %v2714 = vpack.c.b16 %v2546, %v2542
    %v2715 = vpack.c.b16 %v2551, %v2547
    %v2716 = vpack.c.b16 %v2552, %v2548
    %v2717 = vpack.c.b16 %v2553, %v2549
    %v2718 = vpack.c.b16 %v2554, %v2550
    %v2719 = vpack.c.b16 %v2559, %v2555
    %v2720 = vpack.c.b16 %v2560, %v2556
    %v2721 = vpack.c.b16 %v2561, %v2557
    %v2722 = vpack.c.b16 %v2562, %v2558
    %v2723 = vpack.c.b16 %v2567, %v2563
    %v2724 = vpack.c.b16 %v2568, %v2564
    %v2725 = vpack.c.b16 %v2569, %v2565
    %v2726 = vpack.c.b16 %v2570, %v2566
    %v2727 = vpack.c.b16 %v2575, %v2571
    %v2728 = vpack.c.b16 %v2576, %v2572
    %v2729 = vpack.c.b16 %v2577, %v2573
    %v2730 = vpack.c.b16 %v2578, %v2574
    %v2731 = vpack.c.b16 %v2583, %v2579
    %v2732 = vpack.c.b16 %v2584, %v2580
    %v2733 = vpack.c.b16 %v2585, %v2581
    %v2734 = vpack.c.b16 %v2586, %v2582
    %v2735 = vpack.c.b16 %v2591, %v2587
    %v2736 = vpack.c.b16 %v2592, %v2588
    %v2737 = vpack.c.b16 %v2593, %v2589
    %v2738 = vpack.c.b16 %v2594, %v2590
    %v2739 = vpack.c.b16 %v2599, %v2595
    %v2740 = vpack.c.b16 %v2600, %v2596
    %v2741 = vpack.c.b16 %v2601, %v2597
    %v2742 = vpack.c.b16 %v2602, %v2598
    %v2743 = vpack.c.b16 %v2607, %v2603
    %v2744 = vpack.c.b16 %v2608, %v2604
    %v2745 = vpack.c.b16 %v2609, %v2605
    %v2746 = vpack.c.b16 %v2610, %v2606
    %v2747 = vpack.c.b16 %v2615, %v2611
    %v2748 = vpack.c.b16 %v2616, %v2612
    %v2749 = vpack.c.b16 %v2617, %v2613
    %v2750 = vpack.c.b16 %v2618, %v2614
    %v2751 = vpack.c.b16 %v2623, %v2619
    %v2752 = vpack.c.b16 %v2624, %v2620
    %v2753 = vpack.c.b16 %v2625, %v2621
    %v2754 = vpack.c.b16 %v2626, %v2622
    %v2884 = vperm.slane %v2228, 0
    %v2885 = vperm.slane %v2228, 1
    %v2886 = vperm.slane %v2228, 2
    %v2887 = vperm.slane %v2228, 3
    %2892 = vmatpush.bf16.msra.mxu0 %v2655
    %2893 = vmatpush.bf16.msra.mxu0 %v2651
    %2894 = vmatpush.bf16.msra.mxu0 %v2647
    %2895 = vmatpush.bf16.msra.mxu0 %v2643
    %2896 = vmatpush.bf16.msra.mxu0 %v2639
    %2897 = vmatpush.bf16.msra.mxu0 %v2635
    %2898 = vmatpush.bf16.msra.mxu0 %v2631
    %2899 = vmatpush.bf16.msra.mxu0 %v2627
    %2900 = vmatmul.bf16.gmra.mxu0 %v2239
    %v2901 = vpop.f32.mrf.mxu0
    %v2902 = vadd.f32 %v2884, %v2901
    %v2903 = vpop.f32.mrf.mxu0
    %2904 = vdwg.mxu0
    %2905 = vmatpush.bf16.msra.mxu0 %v2687
    %2906 = vmatpush.bf16.msra.mxu0 %v2683
    %2907 = vmatpush.bf16.msra.mxu0 %v2679
    %2908 = vmatpush.bf16.msra.mxu0 %v2675
    %2909 = vmatpush.bf16.msra.mxu0 %v2671
    %2910 = vmatpush.bf16.msra.mxu0 %v2667
    %2911 = vmatpush.bf16.msra.mxu0 %v2663
    %2912 = vmatpush.bf16.msra.mxu0 %v2659
    %2913 = vmatmul.bf16.gmra.mxu0 %v2240
    %v2914 = vpop.f32.mrf.mxu0
    %v2915 = vadd.f32 %v2902, %v2914
    %v2916 = vpop.f32.mrf.mxu0
    %2917 = vdwg.mxu0
    %2918 = vmatpush.bf16.msra.mxu0 %v2719
    %2919 = vmatpush.bf16.msra.mxu0 %v2715
    %2920 = vmatpush.bf16.msra.mxu0 %v2711
    %2921 = vmatpush.bf16.msra.mxu0 %v2707
    %2922 = vmatpush.bf16.msra.mxu0 %v2703
    %2923 = vmatpush.bf16.msra.mxu0 %v2699
    %2924 = vmatpush.bf16.msra.mxu0 %v2695
    %2925 = vmatpush.bf16.msra.mxu0 %v2691
    %2926 = vmatmul.bf16.gmra.mxu0 %v2241
    %v2927 = vpop.f32.mrf.mxu0
    %v2928 = vadd.f32 %v2915, %v2927
    %v2929 = vpop.f32.mrf.mxu0
    %2930 = vdwg.mxu0
    %2931 = vmatpush.bf16.msra.mxu0 %v2751
    %2932 = vmatpush.bf16.msra.mxu0 %v2747
    %2933 = vmatpush.bf16.msra.mxu0 %v2743
    %2934 = vmatpush.bf16.msra.mxu0 %v2739
    %2935 = vmatpush.bf16.msra.mxu0 %v2735
    %2936 = vmatpush.bf16.msra.mxu0 %v2731
    %2937 = vmatpush.bf16.msra.mxu0 %v2727
    %2938 = vmatpush.bf16.msra.mxu0 %v2723
    %2939 = vmatmul.bf16.gmra.mxu0 %v2242
    %v2940 = vpop.f32.mrf.mxu0
    %v2941 = vadd.f32 %v2928, %v2940
    %v2942 = vpop.f32.mrf.mxu0
    %2943 = vdwg.mxu0
    %2944 = vmatpush.bf16.msra.mxu0 %v2656
    %2945 = vmatpush.bf16.msra.mxu0 %v2652
    %2946 = vmatpush.bf16.msra.mxu0 %v2648
    %2947 = vmatpush.bf16.msra.mxu0 %v2644
    %2948 = vmatpush.bf16.msra.mxu0 %v2640
    %2949 = vmatpush.bf16.msra.mxu0 %v2636
    %2950 = vmatpush.bf16.msra.mxu0 %v2632
    %2951 = vmatpush.bf16.msra.mxu0 %v2628
    %2952 = vmatmul.bf16.gmra.mxu0 %v2239
    %v2953 = vpop.f32.mrf.mxu0
    %v2954 = vadd.f32 %v2885, %v2953
    %v2955 = vpop.f32.mrf.mxu0
    %2956 = vdwg.mxu0
    %2957 = vmatpush.bf16.msra.mxu0 %v2688
    %2958 = vmatpush.bf16.msra.mxu0 %v2684
    %2959 = vmatpush.bf16.msra.mxu0 %v2680
    %2960 = vmatpush.bf16.msra.mxu0 %v2676
    %2961 = vmatpush.bf16.msra.mxu0 %v2672
    %2962 = vmatpush.bf16.msra.mxu0 %v2668
    %2963 = vmatpush.bf16.msra.mxu0 %v2664
    %2964 = vmatpush.bf16.msra.mxu0 %v2660
    %2965 = vmatmul.bf16.gmra.mxu0 %v2240
    %v2966 = vpop.f32.mrf.mxu0
    %v2967 = vadd.f32 %v2954, %v2966
    %v2968 = vpop.f32.mrf.mxu0
    %2969 = vdwg.mxu0
    %2970 = vmatpush.bf16.msra.mxu0 %v2720
    %2971 = vmatpush.bf16.msra.mxu0 %v2716
    %2972 = vmatpush.bf16.msra.mxu0 %v2712
    %2973 = vmatpush.bf16.msra.mxu0 %v2708
    %2974 = vmatpush.bf16.msra.mxu0 %v2704
    %2975 = vmatpush.bf16.msra.mxu0 %v2700
    %2976 = vmatpush.bf16.msra.mxu0 %v2696
    %2977 = vmatpush.bf16.msra.mxu0 %v2692
    %2978 = vmatmul.bf16.gmra.mxu0 %v2241
    %v2979 = vpop.f32.mrf.mxu0
    %v2980 = vadd.f32 %v2967, %v2979
    %v2981 = vpop.f32.mrf.mxu0
    %2982 = vdwg.mxu0
    %2983 = vmatpush.bf16.msra.mxu0 %v2752
    %2984 = vmatpush.bf16.msra.mxu0 %v2748
    %2985 = vmatpush.bf16.msra.mxu0 %v2744
    %2986 = vmatpush.bf16.msra.mxu0 %v2740
    %2987 = vmatpush.bf16.msra.mxu0 %v2736
    %2988 = vmatpush.bf16.msra.mxu0 %v2732
    %2989 = vmatpush.bf16.msra.mxu0 %v2728
    %2990 = vmatpush.bf16.msra.mxu0 %v2724
    %2991 = vmatmul.bf16.gmra.mxu0 %v2242
    %v2992 = vpop.f32.mrf.mxu0
    %v2993 = vadd.f32 %v2980, %v2992
    %v2994 = vpop.f32.mrf.mxu0
    %2995 = vdwg.mxu0
    %2996 = vmatpush.bf16.msra.mxu0 %v2657
    %2997 = vmatpush.bf16.msra.mxu0 %v2653
    %2998 = vmatpush.bf16.msra.mxu0 %v2649
    %2999 = vmatpush.bf16.msra.mxu0 %v2645
    %3000 = vmatpush.bf16.msra.mxu0 %v2641
    %3001 = vmatpush.bf16.msra.mxu0 %v2637
    %3002 = vmatpush.bf16.msra.mxu0 %v2633
    %3003 = vmatpush.bf16.msra.mxu0 %v2629
    %3004 = vmatmul.bf16.gmra.mxu0 %v2239
    %v3005 = vpop.f32.mrf.mxu0
    %v3006 = vadd.f32 %v2886, %v3005
    %v3007 = vpop.f32.mrf.mxu0
    %3008 = vdwg.mxu0
    %3009 = vmatpush.bf16.msra.mxu0 %v2689
    %3010 = vmatpush.bf16.msra.mxu0 %v2685
    %3011 = vmatpush.bf16.msra.mxu0 %v2681
    %3012 = vmatpush.bf16.msra.mxu0 %v2677
    %3013 = vmatpush.bf16.msra.mxu0 %v2673
    %3014 = vmatpush.bf16.msra.mxu0 %v2669
    %3015 = vmatpush.bf16.msra.mxu0 %v2665
    %3016 = vmatpush.bf16.msra.mxu0 %v2661
    %3017 = vmatmul.bf16.gmra.mxu0 %v2240
    %v3018 = vpop.f32.mrf.mxu0
    %v3019 = vadd.f32 %v3006, %v3018
    %v3020 = vpop.f32.mrf.mxu0
    %3021 = vdwg.mxu0
    %3022 = vmatpush.bf16.msra.mxu0 %v2721
    %3023 = vmatpush.bf16.msra.mxu0 %v2717
    %3024 = vmatpush.bf16.msra.mxu0 %v2713
    %3025 = vmatpush.bf16.msra.mxu0 %v2709
    %3026 = vmatpush.bf16.msra.mxu0 %v2705
    %3027 = vmatpush.bf16.msra.mxu0 %v2701
    %3028 = vmatpush.bf16.msra.mxu0 %v2697
    %3029 = vmatpush.bf16.msra.mxu0 %v2693
    %3030 = vmatmul.bf16.gmra.mxu0 %v2241
    %v3031 = vpop.f32.mrf.mxu0
    %v3032 = vadd.f32 %v3019, %v3031
    %v3033 = vpop.f32.mrf.mxu0
    %3034 = vdwg.mxu0
    %3035 = vmatpush.bf16.msra.mxu0 %v2753
    %3036 = vmatpush.bf16.msra.mxu0 %v2749
    %3037 = vmatpush.bf16.msra.mxu0 %v2745
    %3038 = vmatpush.bf16.msra.mxu0 %v2741
    %3039 = vmatpush.bf16.msra.mxu0 %v2737
    %3040 = vmatpush.bf16.msra.mxu0 %v2733
    %3041 = vmatpush.bf16.msra.mxu0 %v2729
    %3042 = vmatpush.bf16.msra.mxu0 %v2725
    %3043 = vmatmul.bf16.gmra.mxu0 %v2242
    %v3044 = vpop.f32.mrf.mxu0
    %v3045 = vadd.f32 %v3032, %v3044
    %v3046 = vpop.f32.mrf.mxu0
    %3047 = vdwg.mxu0
    %3048 = vmatpush.bf16.msra.mxu0 %v2658
    %3049 = vmatpush.bf16.msra.mxu0 %v2654
    %3050 = vmatpush.bf16.msra.mxu0 %v2650
    %3051 = vmatpush.bf16.msra.mxu0 %v2646
    %3052 = vmatpush.bf16.msra.mxu0 %v2642
    %3053 = vmatpush.bf16.msra.mxu0 %v2638
    %3054 = vmatpush.bf16.msra.mxu0 %v2634
    %3055 = vmatpush.bf16.msra.mxu0 %v2630
    %3056 = vmatmul.bf16.gmra.mxu0 %v2239
    %v3057 = vpop.f32.mrf.mxu0
    %v3058 = vadd.f32 %v2887, %v3057
    %v3059 = vpop.f32.mrf.mxu0
    %3060 = vdwg.mxu0
    %3061 = vmatpush.bf16.msra.mxu0 %v2690
    %3062 = vmatpush.bf16.msra.mxu0 %v2686
    %3063 = vmatpush.bf16.msra.mxu0 %v2682
    %3064 = vmatpush.bf16.msra.mxu0 %v2678
    %3065 = vmatpush.bf16.msra.mxu0 %v2674
    %3066 = vmatpush.bf16.msra.mxu0 %v2670
    %3067 = vmatpush.bf16.msra.mxu0 %v2666
    %3068 = vmatpush.bf16.msra.mxu0 %v2662
    %3069 = vmatmul.bf16.gmra.mxu0 %v2240
    %v3070 = vpop.f32.mrf.mxu0
    %v3071 = vadd.f32 %v3058, %v3070
    %v3072 = vpop.f32.mrf.mxu0
    %3073 = vdwg.mxu0
    %3074 = vmatpush.bf16.msra.mxu0 %v2722
    %3075 = vmatpush.bf16.msra.mxu0 %v2718
    %3076 = vmatpush.bf16.msra.mxu0 %v2714
    %3077 = vmatpush.bf16.msra.mxu0 %v2710
    %3078 = vmatpush.bf16.msra.mxu0 %v2706
    %3079 = vmatpush.bf16.msra.mxu0 %v2702
    %3080 = vmatpush.bf16.msra.mxu0 %v2698
    %3081 = vmatpush.bf16.msra.mxu0 %v2694
    %3082 = vmatmul.bf16.gmra.mxu0 %v2241
    %v3083 = vpop.f32.mrf.mxu0
    %v3084 = vadd.f32 %v3071, %v3083
    %v3085 = vpop.f32.mrf.mxu0
    %3086 = vdwg.mxu0
    %3087 = vmatpush.bf16.msra.mxu0 %v2754
    %3088 = vmatpush.bf16.msra.mxu0 %v2750
    %3089 = vmatpush.bf16.msra.mxu0 %v2746
    %3090 = vmatpush.bf16.msra.mxu0 %v2742
    %3091 = vmatpush.bf16.msra.mxu0 %v2738
    %3092 = vmatpush.bf16.msra.mxu0 %v2734
    %3093 = vmatpush.bf16.msra.mxu0 %v2730
    %3094 = vmatpush.bf16.msra.mxu0 %v2726
    %3095 = vmatmul.bf16.gmra.mxu0 %v2242
    %v3096 = vpop.f32.mrf.mxu0
    %v3097 = vadd.f32 %v3084, %v3096
    %v3098 = vpop.f32.mrf.mxu0
    %3099 = vdwg.mxu0
    %v3100 = vmul.f32 %v1096, %v1941
    %v3101 = vmul.f32 %v1097, %v1993
    %v3102 = vmul.f32 %v1098, %v2045
    %v3103 = vmul.f32 %v1099, %v2097
    %vm3104 = vcmask 1040384
    %v3105 = vsel %vm3104, %v3100, 0.0
    %v3106 = vsel %vm3104, %v3101, 0.0
    %v3107 = vadd.f32 %v3105, %v3106
    %v3108 = vsel %vm3104, %v3102, 0.0
    %v3109 = vadd.f32 %v3107, %v3108
    %v3110 = vsel %vm3104, %v3103, 0.0
    %v3111 = vadd.f32 %v3109, %v3110
    %3112 = vadd.xlane.f32.xlu0 %v3111
    %v3113 = vpop.xlane.xlu0 %3112
    %v3114 = vsub.f32 %v3113, %v3113
    %v3115 = vmul.f32 %v3114, 1.442695
    %v3116 = vpow.pop %v3115
    %v3117 = vadd.f32 %v3116, 0.0
    %v3118 = vrcp.pop %v3117
    %v3119 = vmul.f32 %v3117, %v3118
    %v3120 = vsub.f32 1.0, %v3119
    %v3121 = vmul.f32 %v3118, %v3120
    %v3122 = vadd.f32 %v3118, %v3121
    %vm3123 = vweird.f32 %v3117
    %vm3124 = vweird.f32 %v3118
    %vm3125 = vmor %vm3123, %vm3124
    %v3126 = vsel %vm3125, %v3118, %v3122
    %v3127 = vand.u32 2147483647, %v3117
    %vm3128 = vcmp.eq.f32.partialorder %v3127, 8.507059e+37
    %v3129 = vand.u32 %v3117, 2147483648
    %v3130 = vor.u32 1.1754944e-38, %v3129
    %v3131 = vsel %vm3128, %v3130, %v3126
    %v3132 = vmul.f32 1.1111112, %v3131
    %v3133 = vld [vmem:[#allocation2] sm:$0x1]
    %vm3134 = vcmp.ge.f32.partialorder %v3133, 0.1
    %v3135 = vmul.f32 %v3116, %v3132
    %v3136 = vsel %vm3134, %v3135, 0.0
    %vm3137 = vcmask 7168
    %v3139 = vsel %vm3137, %v3136, 0
    %v3142 = vsel %vm3104, %v2941, 0
    %v3145 = vsel %vm3104, %v2993, 0
    %v3148 = vsel %vm3104, %v3045, 0
    %v3151 = vsel %vm3104, %v3097, 0
    %3153 = vmatpush.msra.mxu0 0.0
    %3154 = vmatpush.msra.mxu0 0.0
    %3155 = vmatpush.msra.mxu0 0.0
    %3156 = vmatpush.msra.mxu0 0.0
    %3157 = vmatpush.msra.mxu0 0.0
    %3158 = vmatpush.msra.mxu0 0.0
    %3159 = vmatpush.msra.mxu0 0.0
    %3160 = vmatpush.msra.mxu0 0.0
    %3161 = vmatpush.msra.mxu0 0.0
    %3162 = vmatpush.msra.mxu0 0.0
    %3163 = vmatpush.msra.mxu0 0.0
    %3164 = vmatpush.msra.mxu0 0.0
    %3165 = vmatpush.msra.mxu0 0.0
    %3166 = vmatpush.msra.mxu0 0.0
    %3167 = vmatpush.msra.mxu0 0.0
    %3168 = vmatpush.msra.mxu0 %v3142
    %3169 = vmatmul.f32.gmra.mxu0 %v3139
    %v3170 = vpop.f32.mrf.mxu0
    %v3171 = vadd.f32 0.0, %v3170
    %3172 = vdwg.mxu0
    %3173 = vmatpush.msra.mxu0 0.0
    %3174 = vmatpush.msra.mxu0 0.0
    %3175 = vmatpush.msra.mxu0 0.0
    %3176 = vmatpush.msra.mxu0 0.0
    %3177 = vmatpush.msra.mxu0 0.0
    %3178 = vmatpush.msra.mxu0 0.0
    %3179 = vmatpush.msra.mxu0 0.0
    %3180 = vmatpush.msra.mxu0 0.0
    %3181 = vmatpush.msra.mxu0 0.0
    %3182 = vmatpush.msra.mxu0 0.0
    %3183 = vmatpush.msra.mxu0 0.0
    %3184 = vmatpush.msra.mxu0 0.0
    %3185 = vmatpush.msra.mxu0 0.0
    %3186 = vmatpush.msra.mxu0 0.0
    %3187 = vmatpush.msra.mxu0 0.0
    %3188 = vmatpush.msra.mxu0 %v3145
    %3189 = vmatmul.f32.gmra.mxu0 %v3139
    %v3190 = vpop.f32.mrf.mxu0
    %v3191 = vadd.f32 0.0, %v3190
    %3192 = vdwg.mxu0
    %3193 = vmatpush.msra.mxu0 0.0
    %3194 = vmatpush.msra.mxu0 0.0
    %3195 = vmatpush.msra.mxu0 0.0
    %3196 = vmatpush.msra.mxu0 0.0
    %3197 = vmatpush.msra.mxu0 0.0
    %3198 = vmatpush.msra.mxu0 0.0
    %3199 = vmatpush.msra.mxu0 0.0
    %3200 = vmatpush.msra.mxu0 0.0
    %3201 = vmatpush.msra.mxu0 0.0
    %3202 = vmatpush.msra.mxu0 0.0
    %3203 = vmatpush.msra.mxu0 0.0
    %3204 = vmatpush.msra.mxu0 0.0
    %3205 = vmatpush.msra.mxu0 0.0
    %3206 = vmatpush.msra.mxu0 0.0
    %3207 = vmatpush.msra.mxu0 0.0
    %3208 = vmatpush.msra.mxu0 %v3148
    %3209 = vmatmul.f32.gmra.mxu0 %v3139
    %v3210 = vpop.f32.mrf.mxu0
    %v3211 = vadd.f32 0.0, %v3210
    %3212 = vdwg.mxu0
    %3213 = vmatpush.msra.mxu0 0.0
    %3214 = vmatpush.msra.mxu0 0.0
    %3215 = vmatpush.msra.mxu0 0.0
    %3216 = vmatpush.msra.mxu0 0.0
    %3217 = vmatpush.msra.mxu0 0.0
    %3218 = vmatpush.msra.mxu0 0.0
    %3219 = vmatpush.msra.mxu0 0.0
    %3220 = vmatpush.msra.mxu0 0.0
    %3221 = vmatpush.msra.mxu0 0.0
    %3222 = vmatpush.msra.mxu0 0.0
    %3223 = vmatpush.msra.mxu0 0.0
    %3224 = vmatpush.msra.mxu0 0.0
    %3225 = vmatpush.msra.mxu0 0.0
    %3226 = vmatpush.msra.mxu0 0.0
    %3227 = vmatpush.msra.mxu0 0.0
    %3228 = vmatpush.msra.mxu0 %v3151
    %3229 = vmatmul.f32.gmra.mxu0 %v3139
    %v3230 = vpop.f32.mrf.mxu0
    %v3231 = vadd.f32 0.0, %v3230
    %3232 = vdwg.mxu0
    %v3237 = vrot.slane %v3191, 7
    %v3238 = vrot.slane %v3211, 6
    %v3239 = vrot.slane %v3231, 5
    %v3240 = vsel %vm3104, %v3171, %v3237
    %vm3241 = vcmask 1042434
    %v3242 = vsel %vm3241, %v3238, %v3239
    %vm3243 = vcmask 1041408
    %v3244 = vsel %vm3243, %v3240, %v3242
    %v3246 = vlaneseq
    %vm3247 = vcmp.ge.s32.totalorder %v3246, 0
    %vm3248 = vcmp.lt.s32.totalorder %v3246, 512
    %vm3249 = vmand %vm3247, %vm3248
    %3250 = vst.msk [vmem:[#allocation12] sm:$0xf] %vm3249, %v3244
    // Predicated region
    $region46: #{model_forward.1} parent=1 // pred_check
      _
    $region47: #{model_forward.1} parent=1 // pred_check_branch
      %3252 = sbr.rel (0) target = $region49
    $region48: #{model_forward.1} parent=1 // pred_region
      %3254 = vsyncadd [#allocation5], 0
      %s3256 = sshll.u32 [#allocation12], 4
      %s3257 = int_to_ptr.vmem [resolvable:$true] %s3256
      %s3258 = sshll.u32 %s6, 4
      %s3259 = int_to_ptr.hbm [resolvable:$true] %s3258
      %3261 = dma.vmem_to_hbm [thread:$0]  %s3257, 64, %s3259, [#allocation5]
    $region49: #{model_forward.1} parent=1 // pred_fallthru
      _
    // Predicated region
    $region50: #{model_forward.1} parent=1 // pred_check
      _
    $region51: #{model_forward.1} parent=1 // pred_check_branch
      %3263 = sbr.rel (0) target = $region53
    $region52: #{model_forward.1} parent=1 // pred_region
      %3265 = dma.done [#allocation5], 64
    $region53: #{model_forward.1} parent=1 // pred_fallthru
      _
    %3266 = vsyncpa [#allocation4], 1
    %3267 = vsyncpa [#allocation7], 1
    %3268 = vsyncpa [#allocation10], 1
    %3269 = vsyncpa [#allocation5], 1

</llo_original>
